<compile_context>
chip_gen: v7x
topology: tpu7x:2x2x1
jax: 0.10.0
libtpu: 0.0.40
codegen_flags: <defaults>
</compile_context>

<pallas_src>
import functools

import jax
import jax.numpy as jnp
import numpy as np
from jax.experimental import pallas as pl
from jax.experimental.pallas import tpu as pltpu

_COMPUTE_DTYPE = jnp.bfloat16
_VMEM_LIMIT = 64 * 1024 * 1024

# output-row parity rh -> ((kernel tap kh, input row offset dy), ...)
# (the same pairs apply to the W axis as (kw, dx))
_TAPS = (((1, 0), (3, -1)), ((2, 0), (0, 1)))

_WHOLE_VMEM = pl.BlockSpec(memory_space=pltpu.MemorySpace.VMEM)


# --------------------------------------------------------------------------
# Kernel 1: initial ConvTranspose2d(nz, cngf, 4, stride=1, pad=0) on a 1x1
# input == a single matmul.  Weight is pre-permuted so the output is already
# NHWC-flat (no post-call transpose).  Fused ReLU, bf16 out.
# --------------------------------------------------------------------------
def _init_convt_kernel(z_ref, w_ref, o_ref):
    # z_ref: (B, nz)   w_ref: (nz, 4*4*cngf) [(kh,kw,co) flat]   o_ref: (B, 4*4*cngf)
    h = jnp.dot(z_ref[...], w_ref[...], preferred_element_type=jnp.float32)
    o_ref[...] = jnp.maximum(h, 0.0).astype(o_ref.dtype)


# --------------------------------------------------------------------------
# Kernel 2: ConvTranspose2d(Cin, Cout, 4, stride=2, pad=1) + activation for
# one image.  PyTorch semantics: out[oh,ow,co] += x[ih,iw,ci]*W[ci,co,kh,kw]
# with oh = 2*ih - 1 + kh.  Each output parity (oh = 2p+rh, ow = 2q+rw) gets
# exactly 2x2 kernel taps; the 4 taps are fused into ONE matmul with K=4*Cin.
# Output layout: o[0, p, rh, q, rw*Cout + c] = out[2p+rh, 2q+rw, c], which is
# row-major identical to (2H, 2W, Cout).
# --------------------------------------------------------------------------
def _convt_s2_kernel(x_ref, w_ref, o_ref, *, act):
    # x_ref: (1, H, W, Cin)        unpadded NHWC input block (one image)
    # w_ref: (2, 2, 4*Cin, Cout)   per-parity K-fused weights
    # o_ref: (1, H, 2, W, 2*Cout)  parity-folded output block
    _, H, W, Cin = x_ref.shape
    Cout = o_ref.shape[-1] // 2

    x = x_ref[0]                                            # (H, W, Cin)

    # Zero-pad by 1 inside VMEM (no jnp.pad HBM pass in the wrapper).
    zrow = jnp.zeros((1, W, Cin), x.dtype)
    xh = jnp.concatenate([zrow, x, zrow], axis=0)           # (H+2, W, Cin)
    zcol = jnp.zeros((H + 2, 1, Cin), x.dtype)
    xp = jnp.concatenate([zcol, xh, zcol], axis=1)          # (H+2, W+2, Cin)

    # One flattened, column-shifted copy per dx; every tap window is then a
    # contiguous row slice of one of these (9 distinct windows, built once).
    xf = {dx: xp[:, 1 + dx:1 + dx + W, :].reshape((H + 2) * W, Cin)
          for dx in (-1, 0, 1)}
    win = {}

    def window(dy, dx):
        if (dy, dx) not in win:
            r0 = (1 + dy) * W
            win[(dy, dx)] = xf[dx][r0:r0 + H * W, :]        # (H*W, Cin)
        return win[(dy, dx)]

    rows = []
    for rh in range(2):
        ys = []
        for rw in range(2):
            # Fuse the 4 taps of this parity into one MXU matmul: K = 4*Cin.
            patch = jnp.concatenate(
                [window(dy, dx) for _, dy in _TAPS[rh] for _, dx in _TAPS[rw]],
                axis=1)                                     # (H*W, 4*Cin)
            acc = jnp.dot(patch, w_ref[rh, rw],
                          preferred_element_type=jnp.float32)  # (H*W, Cout)
            if act == "relu":
                y = jnp.maximum(acc, 0.0)
            else:  # sigmoid (final layer)
                y = jax.nn.sigmoid(acc)
            ys.append(y)
        z = jnp.concatenate(ys, axis=-1).astype(o_ref.dtype)   # (H*W, 2*Cout)
        rows.append(z.reshape(H, W, 2 * Cout))
    o_ref[0] = jnp.stack(rows, axis=1)                      # (H, 2, W, 2*Cout)


# --------------------------------------------------------------------------
# Layer wrappers (weight packing / free reshapes in plain JAX)
# --------------------------------------------------------------------------
def _pack_convt_weights(w, dtype):
    # w: PyTorch ConvTranspose2d weight (Cin, Cout, 4, 4) ->
    #    per-parity K-fused blocks (2, 2, 4*Cin, Cout), same tap order as kernel.
    wk = jnp.transpose(w, (2, 3, 0, 1))                     # (kh, kw, Cin, Cout)
    rows = []
    for rh in range(2):
        cols = []
        for rw in range(2):
            cols.append(jnp.concatenate(
                [wk[kh, kw] for kh, _ in _TAPS[rh] for kw, _ in _TAPS[rw]],
                axis=0))                                    # (4*Cin, Cout)
        rows.append(jnp.stack(cols))
    return jnp.stack(rows).astype(dtype)                    # (2, 2, 4*Cin, Cout)


def _convt_s2_layer(x_nhwc, w, *, act, out_dtype):
    B, H, W, Cin = x_nhwc.shape
    Cout = w.shape[1]
    x_c = x_nhwc.astype(_COMPUTE_DTYPE)
    w_par = _pack_convt_weights(w, _COMPUTE_DTYPE)

    itm = jnp.dtype(_COMPUTE_DTYPE).itemsize
    flops = 2 * B * (2 * H) * (2 * W) * (4 * Cin) * Cout
    transc = B * (2 * H) * (2 * W) * Cout if act == "sigmoid" else 0
    bytes_accessed = (B * H * W * Cin * itm + 16 * Cin * Cout * itm
                      + B * 4 * H * W * Cout * jnp.dtype(out_dtype).itemsize)

    out5 = pl.pallas_call(
        functools.partial(_convt_s2_kernel, act=act),
        out_shape=jax.ShapeDtypeStruct((B, H, 2, W, 2 * Cout), out_dtype),
        grid=(B,),
        in_specs=[
            pl.BlockSpec((1, H, W, Cin), lambda b: (b, 0, 0, 0)),
            pl.BlockSpec((2, 2, 4 * Cin, Cout), lambda b: (0, 0, 0, 0)),
        ],
        out_specs=pl.BlockSpec((1, H, 2, W, 2 * Cout),
                               lambda b: (b, 0, 0, 0, 0)),
        compiler_params=pltpu.CompilerParams(
            dimension_semantics=("parallel",),
            vmem_limit_bytes=_VMEM_LIMIT),
        cost_estimate=pl.CostEstimate(flops=flops, transcendentals=transc,
                                      bytes_accessed=bytes_accessed),
    )(x_c, w_par)
    # (B, H, 2, W, 2*Cout) is row-major identical to (B, 2H, 2W, Cout):
    # the parity de-interleave is a free reshape, not an HBM transpose pass.
    return out5.reshape(B, 2 * H, 2 * W, Cout)


def _initial_layer(z2d, w0):
    # z2d: (B, nz), w0: PyTorch ConvTranspose2d weight (nz, cngf, 4, 4)
    B = z2d.shape[0]
    nz, cngf, kh, kw = w0.shape
    # Pre-permute to NHWC order so the kernel output is already (B,4,4,cngf)-flat.
    w_flat = jnp.transpose(w0, (0, 2, 3, 1)).reshape(nz, kh * kw * cngf)
    z_c = z2d.astype(_COMPUTE_DTYPE)
    w_c = w_flat.astype(_COMPUTE_DTYPE)
    itm = jnp.dtype(_COMPUTE_DTYPE).itemsize
    out = pl.pallas_call(
        _init_convt_kernel,
        out_shape=jax.ShapeDtypeStruct((B, kh * kw * cngf), _COMPUTE_DTYPE),
        in_specs=[_WHOLE_VMEM, _WHOLE_VMEM],
        out_specs=_WHOLE_VMEM,
        compiler_params=pltpu.CompilerParams(vmem_limit_bytes=_VMEM_LIMIT),
        cost_estimate=pl.CostEstimate(
            flops=2 * B * nz * kh * kw * cngf, transcendentals=0,
            bytes_accessed=(B * nz + nz * kh * kw * cngf + B * kh * kw * cngf) * itm),
    )(z_c, w_c)
    return out.reshape(B, kh, kw, cngf)                     # NHWC, free reshape


# --------------------------------------------------------------------------
# Parameter construction mirroring DCGAN_G_nobn.__init__ (deterministic).
# --------------------------------------------------------------------------
def make_params(isize, nz, nc, ngf, n_extra_layers=0, scale=0.05):
    assert isize % 16 == 0, "isize has to be a multiple of 16"
    # TODO(synk): n_extra_layers > 0 (3x3 same-padding Conv2d blocks) not
    # implemented; the module default (0) is used.
    assert n_extra_layers == 0
    cngf, tisize = ngf // 2, 4
    while tisize != isize:
        cngf, tisize = cngf * 2, tisize * 2
    key = jax.random.PRNGKey(0)
    key, k = jax.random.split(key)
    params = {"initial": scale * jax.random.normal(k, (nz, cngf, 4, 4), jnp.float32)}
    pyramid, csize = [], 4
    while csize < isize // 2:
        key, k = jax.random.split(key)
        pyramid.append(scale * jax.random.normal(k, (cngf, cngf // 2, 4, 4), jnp.float32))
        cngf, csize = cngf // 2, csize * 2
    params["pyramid"] = pyramid
    key, k = jax.random.split(key)
    params["final"] = scale * jax.random.normal(k, (cngf, nc, 4, 4), jnp.float32)
    return params


def dcgan_g_nobn_forward(params, z_nchw, attr, nfeatures):
    # z_nchw: (B, nz - nfeatures, 1, 1), attr: (B, nfeatures)
    B = z_nchw.shape[0]
    attr = attr.reshape(B, nfeatures, 1, 1)
    x = jnp.concatenate([z_nchw, attr], axis=1)             # (B, nz, 1, 1)
    h = _initial_layer(x.reshape(B, -1), params["initial"])  # (B, 4, 4, cngf) bf16
    for w in params["pyramid"]:
        h = _convt_s2_layer(h, w, act="relu", out_dtype=_COMPUTE_DTYPE)
    h = _convt_s2_layer(h, params["final"], act="sigmoid", out_dtype=jnp.float32)
    return h.transpose(0, 3, 1, 2)                          # NCHW output (f32)


# --------------------------------------------------------------------------
# Pure-JAX reference (independent f32 path via lax.conv_general_dilated)
# --------------------------------------------------------------------------
def _ref_convt_s2(x_nchw, w):
    w_f = jnp.flip(w, axis=(2, 3)).transpose(2, 3, 0, 1)    # (kh, kw, Cin, Cout)
    y = jax.lax.conv_general_dilated(
        x_nchw.transpose(0, 2, 3, 1), w_f, window_strides=(1, 1),
        padding=[(2, 2), (2, 2)], lhs_dilation=(2, 2),
        dimension_numbers=("NHWC", "HWIO", "NHWC"),
        precision=jax.lax.Precision.HIGHEST)
    return y.transpose(0, 3, 1, 2)


def ref_forward(params, z_nchw, attr, nfeatures):
    B = z_nchw.shape[0]
    x = jnp.concatenate([z_nchw, attr.reshape(B, nfeatures, 1, 1)], axis=1)
    h = jnp.einsum("bi,iokl->bokl", x[:, :, 0, 0], params["initial"],
                   precision=jax.lax.Precision.HIGHEST)
    h = jnp.maximum(h, 0.0)
    for w in params["pyramid"]:
        h = jnp.maximum(_ref_convt_s2(h, w), 0.0)
    return jax.nn.sigmoid(_ref_convt_s2(h, params["final"]))


if __name__ == "__main__":
    isize, nz, nc, ngf, nfeatures = 16, 8, 3, 8, 4
    B = 2
    params = make_params(isize, nz, nc, ngf)

    kz, ka = jax.random.split(jax.random.PRNGKey(0))
    z = jax.random.normal(kz, (B, nz - nfeatures, 1, 1), jnp.float32)
    attr = jax.random.normal(ka, (B, nfeatures), jnp.float32)

    fwd = jax.jit(dcgan_g_nobn_forward, static_argnums=(3,))
    out = jax.block_until_ready(fwd(params, z, attr, nfeatures))
    assert out.shape == (B, nc, isize, isize), out.shape

    ref = ref_forward(params, z, attr, nfeatures)
    # bf16 activations/weights (f32 accumulation) vs the pure-f32 reference.
    np.testing.assert_allclose(np.asarray(out), np.asarray(ref),
                               rtol=2e-2, atol=2e-2)
    print("KERNEL_OK")
</pallas_src>

<mosaic_0001>
module attributes {stable_mosaic.version = 11 : i64} {
  func.func @_init_convt_kernel(%arg0: memref<2x8xbf16, #tpu.memory_space<vmem>>, %arg1: memref<8x256xbf16, #tpu.memory_space<vmem>>, %arg2: memref<2x256xbf16, #tpu.memory_space<vmem>>) attributes {dimension_semantics = [], scalar_prefetch = 0 : i64, scratch_operands = 0 : i64, tpu.core_type = #tpu.core_type<tc>} {
    %c0 = arith.constant 0 : index
    %c0_0 = arith.constant 0 : index
    %0 = vector.load %arg0[%c0, %c0_0] : memref<2x8xbf16, #tpu.memory_space<vmem>>, vector<2x8xbf16>
    %c0_1 = arith.constant 0 : index
    %c0_2 = arith.constant 0 : index
    %1 = vector.load %arg1[%c0_1, %c0_2] : memref<8x256xbf16, #tpu.memory_space<vmem>>, vector<8x256xbf16>
    %cst = arith.constant dense<0.000000e+00> : vector<2x256xf32>
    %2 = tpu.matmul %0, %1, %cst {dimension_numbers = #tpu.dot_dimension_numbers<[1], [0], [0], [1], [0, 0, 1, 1], [], []>} : vector<2x8xbf16>, vector<8x256xbf16>, vector<2x256xf32> -> vector<2x256xf32>
    %cst_3 = arith.constant 0.000000e+00 : f32
    %3 = vector.broadcast %cst_3 : f32 to vector<2x256xf32>
    %4 = arith.maximumf %2, %3 : vector<2x256xf32>
    %5 = arith.truncf %4 : vector<2x256xf32> to vector<2x256xbf16>
    %c0_4 = arith.constant 0 : index
    %c0_5 = arith.constant 0 : index
    %6 = vector.load %arg2[%c0_4, %c0_5] : memref<2x256xbf16, #tpu.memory_space<vmem>>, vector<2x256xbf16>
    tpu.vector_store %arg2[%c0_4, %c0_5], %5 {strides = array<i32>} : memref<2x256xbf16, #tpu.memory_space<vmem>>, vector<2x256xbf16>,
    return
  }
}

module attributes {stable_mosaic.version = 11 : i64} {
  func.func @_convt_s2_kernel(%arg0: i32, %arg1: memref<1x4x4x16xbf16, #tpu.memory_space<vmem>>, %arg2: memref<2x2x64x8xbf16, #tpu.memory_space<vmem>>, %arg3: memref<1x4x2x4x16xbf16, #tpu.memory_space<vmem>>) attributes {dimension_semantics = [#tpu.dimension_semantics<parallel>], iteration_bounds = array<i64: 2>, scalar_prefetch = 0 : i64, scratch_operands = 0 : i64, tpu.core_type = #tpu.core_type<tc>, window_params = [{transform_indices = @transform_0, window_bounds = array<i64: 1, 4, 4, 16>}, {pipeline_mode = #tpu.pipeline_mode<synchronous>, transform_indices = @transform_1, window_bounds = array<i64: 2, 2, 64, 8>}, {transform_indices = @transform_2, window_bounds = array<i64: 1, 4, 2, 4, 16>}]} {
    %c0 = arith.constant 0 : index
    %c0_0 = arith.constant 0 : index
    %c0_1 = arith.constant 0 : index
    %c0_2 = arith.constant 0 : index
    %0 = vector.load %arg1[%c0, %c0_0, %c0_1, %c0_2] : memref<1x4x4x16xbf16, #tpu.memory_space<vmem>>, vector<1x4x4x16xbf16>
    %1 = vector.shape_cast %0 : vector<1x4x4x16xbf16> to vector<4x4x16xbf16>
    %cst = arith.constant 0.000000e+00 : bf16
    %2 = vector.broadcast %cst : bf16 to vector<1x4x16xbf16>
    %3 = tpu.concatenate %2, %1, %2 in 0 : vector<1x4x16xbf16>, vector<4x4x16xbf16>, vector<1x4x16xbf16> -> vector<6x4x16xbf16>
    %cst_3 = arith.constant 0.000000e+00 : bf16
    %4 = vector.broadcast %cst_3 : bf16 to vector<6x1x16xbf16>
    %5 = tpu.concatenate %4, %3, %4 in 1 : vector<6x1x16xbf16>, vector<6x4x16xbf16>, vector<6x1x16xbf16> -> vector<6x6x16xbf16>
    %6 = vector.extract_strided_slice %5 {offsets = [0, 0, 0], sizes = [6, 4, 16], strides = [1, 1, 1]} : vector<6x6x16xbf16> to vector<6x4x16xbf16>
    %7 = vector.shape_cast %6 : vector<6x4x16xbf16> to vector<24x16xbf16>
    %8 = vector.extract_strided_slice %5 {offsets = [0, 1, 0], sizes = [6, 4, 16], strides = [1, 1, 1]} : vector<6x6x16xbf16> to vector<6x4x16xbf16>
    %9 = vector.shape_cast %8 : vector<6x4x16xbf16> to vector<24x16xbf16>
    %10 = vector.extract_strided_slice %5 {offsets = [0, 2, 0], sizes = [6, 4, 16], strides = [1, 1, 1]} : vector<6x6x16xbf16> to vector<6x4x16xbf16>
    %11 = vector.shape_cast %10 : vector<6x4x16xbf16> to vector<24x16xbf16>
    %12 = vector.extract_strided_slice %9 {offsets = [4, 0], sizes = [16, 16], strides = [1, 1]} : vector<24x16xbf16> to vector<16x16xbf16>
    %13 = vector.extract_strided_slice %7 {offsets = [4, 0], sizes = [16, 16], strides = [1, 1]} : vector<24x16xbf16> to vector<16x16xbf16>
    %14 = vector.extract_strided_slice %9 {offsets = [0, 0], sizes = [16, 16], strides = [1, 1]} : vector<24x16xbf16> to vector<16x16xbf16>
    %15 = vector.extract_strided_slice %7 {offsets = [0, 0], sizes = [16, 16], strides = [1, 1]} : vector<24x16xbf16> to vector<16x16xbf16>
    %16 = tpu.concatenate %12, %13, %14, %15 in 1 : vector<16x16xbf16>, vector<16x16xbf16>, vector<16x16xbf16>, vector<16x16xbf16> -> vector<16x64xbf16>
    %c0_4 = arith.constant 0 : index
    %c0_5 = arith.constant 0 : index
    %c0_6 = arith.constant 0 : index
    %c0_7 = arith.constant 0 : index
    %17 = vector.load %arg2[%c0_4, %c0_5, %c0_6, %c0_7] : memref<2x2x64x8xbf16, #tpu.memory_space<vmem>>, vector<1x1x64x8xbf16>
    %18 = vector.shape_cast %17 : vector<1x1x64x8xbf16> to vector<64x8xbf16>
    %cst_8 = arith.constant dense<0.000000e+00> : vector<16x8xf32>
    %19 = tpu.matmul %16, %18, %cst_8 {dimension_numbers = #tpu.dot_dimension_numbers<[1], [0], [0], [1], [0, 0, 1, 1], [], []>} : vector<16x64xbf16>, vector<64x8xbf16>, vector<16x8xf32> -> vector<16x8xf32>
    %cst_9 = arith.constant 0.000000e+00 : f32
    %20 = vector.broadcast %cst_9 : f32 to vector<16x8xf32>
    %21 = arith.maximumf %19, %20 : vector<16x8xf32>
    %22 = vector.extract_strided_slice %11 {offsets = [4, 0], sizes = [16, 16], strides = [1, 1]} : vector<24x16xbf16> to vector<16x16xbf16>
    %23 = vector.extract_strided_slice %11 {offsets = [0, 0], sizes = [16, 16], strides = [1, 1]} : vector<24x16xbf16> to vector<16x16xbf16>
    %24 = tpu.concatenate %12, %22, %14, %23 in 1 : vector<16x16xbf16>, vector<16x16xbf16>, vector<16x16xbf16>, vector<16x16xbf16> -> vector<16x64xbf16>
    %c0_10 = arith.constant 0 : index
    %c1 = arith.constant 1 : index
    %c0_11 = arith.constant 0 : index
    %c0_12 = arith.constant 0 : index
    %25 = vector.load %arg2[%c0_10, %c1, %c0_11, %c0_12] : memref<2x2x64x8xbf16, #tpu.memory_space<vmem>>, vector<1x1x64x8xbf16>
    %26 = vector.shape_cast %25 : vector<1x1x64x8xbf16> to vector<64x8xbf16>
    %cst_13 = arith.constant dense<0.000000e+00> : vector<16x8xf32>
    %27 = tpu.matmul %24, %26, %cst_13 {dimension_numbers = #tpu.dot_dimension_numbers<[1], [0], [0], [1], [0, 0, 1, 1], [], []>} : vector<16x64xbf16>, vector<64x8xbf16>, vector<16x8xf32> -> vector<16x8xf32>
    %cst_14 = arith.constant 0.000000e+00 : f32
    %28 = vector.broadcast %cst_14 : f32 to vector<16x8xf32>
    %29 = arith.maximumf %27, %28 : vector<16x8xf32>
    %30 = tpu.concatenate %21, %29 in 1 : vector<16x8xf32>, vector<16x8xf32> -> vector<16x16xf32>
    %31 = arith.truncf %30 : vector<16x16xf32> to vector<16x16xbf16>
    %32 = vector.shape_cast %31 : vector<16x16xbf16> to vector<4x4x16xbf16>
    %33 = vector.extract_strided_slice %9 {offsets = [8, 0], sizes = [16, 16], strides = [1, 1]} : vector<24x16xbf16> to vector<16x16xbf16>
    %34 = vector.extract_strided_slice %7 {offsets = [8, 0], sizes = [16, 16], strides = [1, 1]} : vector<24x16xbf16> to vector<16x16xbf16>
    %35 = tpu.concatenate %12, %13, %33, %34 in 1 : vector<16x16xbf16>, vector<16x16xbf16>, vector<16x16xbf16>, vector<16x16xbf16> -> vector<16x64xbf16>
    %c1_15 = arith.constant 1 : index
    %c0_16 = arith.constant 0 : index
    %c0_17 = arith.constant 0 : index
    %c0_18 = arith.constant 0 : index
    %36 = vector.load %arg2[%c1_15, %c0_16, %c0_17, %c0_18] : memref<2x2x64x8xbf16, #tpu.memory_space<vmem>>, vector<1x1x64x8xbf16>
    %37 = vector.shape_cast %36 : vector<1x1x64x8xbf16> to vector<64x8xbf16>
    %cst_19 = arith.constant dense<0.000000e+00> : vector<16x8xf32>
    %38 = tpu.matmul %35, %37, %cst_19 {dimension_numbers = #tpu.dot_dimension_numbers<[1], [0], [0], [1], [0, 0, 1, 1], [], []>} : vector<16x64xbf16>, vector<64x8xbf16>, vector<16x8xf32> -> vector<16x8xf32>
    %cst_20 = arith.constant 0.000000e+00 : f32
    %39 = vector.broadcast %cst_20 : f32 to vector<16x8xf32>
    %40 = arith.maximumf %38, %39 : vector<16x8xf32>
    %41 = vector.extract_strided_slice %11 {offsets = [8, 0], sizes = [16, 16], strides = [1, 1]} : vector<24x16xbf16> to vector<16x16xbf16>
    %42 = tpu.concatenate %12, %22, %33, %41 in 1 : vector<16x16xbf16>, vector<16x16xbf16>, vector<16x16xbf16>, vector<16x16xbf16> -> vector<16x64xbf16>
    %c1_21 = arith.constant 1 : index
    %c1_22 = arith.constant 1 : index
    %c0_23 = arith.constant 0 : index
    %c0_24 = arith.constant 0 : index
    %43 = vector.load %arg2[%c1_21, %c1_22, %c0_23, %c0_24] : memref<2x2x64x8xbf16, #tpu.memory_space<vmem>>, vector<1x1x64x8xbf16>
    %44 = vector.shape_cast %43 : vector<1x1x64x8xbf16> to vector<64x8xbf16>
    %cst_25 = arith.constant dense<0.000000e+00> : vector<16x8xf32>
    %45 = tpu.matmul %42, %44, %cst_25 {dimension_numbers = #tpu.dot_dimension_numbers<[1], [0], [0], [1], [0, 0, 1, 1], [], []>} : vector<16x64xbf16>, vector<64x8xbf16>, vector<16x8xf32> -> vector<16x8xf32>
    %cst_26 = arith.constant 0.000000e+00 : f32
    %46 = vector.broadcast %cst_26 : f32 to vector<16x8xf32>
    %47 = arith.maximumf %45, %46 : vector<16x8xf32>
    %48 = tpu.concatenate %40, %47 in 1 : vector<16x8xf32>, vector<16x8xf32> -> vector<16x16xf32>
    %49 = arith.truncf %48 : vector<16x16xf32> to vector<16x16xbf16>
    %50 = vector.shape_cast %49 : vector<16x16xbf16> to vector<4x4x16xbf16>
    %51 = vector.shape_cast %32 : vector<4x4x16xbf16> to vector<4x1x4x16xbf16>
    %52 = vector.shape_cast %50 : vector<4x4x16xbf16> to vector<4x1x4x16xbf16>
    %53 = tpu.concatenate %51, %52 in 1 : vector<4x1x4x16xbf16>, vector<4x1x4x16xbf16> -> vector<4x2x4x16xbf16>
    %c0_27 = arith.constant 0 : index
    %c0_28 = arith.constant 0 : index
    %c0_29 = arith.constant 0 : index
    %c0_30 = arith.constant 0 : index
    %c0_31 = arith.constant 0 : index
    %54 = vector.load %arg3[%c0_27, %c0_28, %c0_29, %c0_30, %c0_31] : memref<1x4x2x4x16xbf16, #tpu.memory_space<vmem>>, vector<1x4x2x4x16xbf16>
    %55 = vector.shape_cast %54 : vector<1x4x2x4x16xbf16> to vector<4x2x4x16xbf16>
    %56 = vector.shape_cast %53 : vector<4x2x4x16xbf16> to vector<1x4x2x4x16xbf16>
    tpu.vector_store %arg3[%c0_27, %c0_28, %c0_29, %c0_30, %c0_31], %56 {strides = array<i32>} : memref<1x4x2x4x16xbf16, #tpu.memory_space<vmem>>, vector<1x4x2x4x16xbf16>,
    return
  }
  func.func @transform_0(%arg0: i32) -> (i32, i32, i32, i32) {
    %c0_i32 = arith.constant 0 : i32
    %c0_i32_0 = arith.constant 0 : i32
    %c0_i32_1 = arith.constant 0 : i32
    %c0_i32_2 = arith.constant 0 : i32
    return %arg0, %c0_i32, %c0_i32_0, %c0_i32_1 : i32, i32, i32, i32
  }
  func.func @transform_1(%arg0: i32) -> (i32, i32, i32, i32) {
    %c0_i32 = arith.constant 0 : i32
    %c0_i32_0 = arith.constant 0 : i32
    %c0_i32_1 = arith.constant 0 : i32
    %c0_i32_2 = arith.constant 0 : i32
    %c0_i32_3 = arith.constant 0 : i32
    return %c0_i32, %c0_i32_0, %c0_i32_1, %c0_i32_2 : i32, i32, i32, i32
  }
  func.func @transform_2(%arg0: i32) -> (i32, i32, i32, i32, i32) {
    %c0_i32 = arith.constant 0 : i32
    %c0_i32_0 = arith.constant 0 : i32
    %c0_i32_1 = arith.constant 0 : i32
    %c0_i32_2 = arith.constant 0 : i32
    %c0_i32_3 = arith.constant 0 : i32
    return %arg0, %c0_i32, %c0_i32_0, %c0_i32_1, %c0_i32_2 : i32, i32, i32, i32, i32
  }
}

module attributes {stable_mosaic.version = 11 : i64} {
  func.func @_convt_s2_kernel(%arg0: i32, %arg1: memref<1x8x8x8xbf16, #tpu.memory_space<vmem>>, %arg2: memref<2x2x32x3xbf16, #tpu.memory_space<vmem>>, %arg3: memref<1x8x2x8x6xf32, #tpu.memory_space<vmem>>) attributes {dimension_semantics = [#tpu.dimension_semantics<parallel>], iteration_bounds = array<i64: 2>, scalar_prefetch = 0 : i64, scratch_operands = 0 : i64, tpu.core_type = #tpu.core_type<tc>, window_params = [{transform_indices = @transform_0, window_bounds = array<i64: 1, 8, 8, 8>}, {pipeline_mode = #tpu.pipeline_mode<synchronous>, transform_indices = @transform_1, window_bounds = array<i64: 2, 2, 32, 3>}, {transform_indices = @transform_2, window_bounds = array<i64: 1, 8, 2, 8, 6>}]} {
    %c0 = arith.constant 0 : index
    %c0_0 = arith.constant 0 : index
    %c0_1 = arith.constant 0 : index
    %c0_2 = arith.constant 0 : index
    %0 = vector.load %arg1[%c0, %c0_0, %c0_1, %c0_2] : memref<1x8x8x8xbf16, #tpu.memory_space<vmem>>, vector<1x8x8x8xbf16>
    %1 = vector.shape_cast %0 : vector<1x8x8x8xbf16> to vector<8x8x8xbf16>
    %cst = arith.constant 0.000000e+00 : bf16
    %2 = vector.broadcast %cst : bf16 to vector<1x8x8xbf16>
    %3 = tpu.concatenate %2, %1, %2 in 0 : vector<1x8x8xbf16>, vector<8x8x8xbf16>, vector<1x8x8xbf16> -> vector<10x8x8xbf16>
    %cst_3 = arith.constant 0.000000e+00 : bf16
    %4 = vector.broadcast %cst_3 : bf16 to vector<10x1x8xbf16>
    %5 = tpu.concatenate %4, %3, %4 in 1 : vector<10x1x8xbf16>, vector<10x8x8xbf16>, vector<10x1x8xbf16> -> vector<10x10x8xbf16>
    %6 = vector.extract_strided_slice %5 {offsets = [0, 0, 0], sizes = [10, 8, 8], strides = [1, 1, 1]} : vector<10x10x8xbf16> to vector<10x8x8xbf16>
    %7 = vector.shape_cast %6 : vector<10x8x8xbf16> to vector<80x8xbf16>
    %8 = vector.extract_strided_slice %5 {offsets = [0, 1, 0], sizes = [10, 8, 8], strides = [1, 1, 1]} : vector<10x10x8xbf16> to vector<10x8x8xbf16>
    %9 = vector.shape_cast %8 : vector<10x8x8xbf16> to vector<80x8xbf16>
    %10 = vector.extract_strided_slice %5 {offsets = [0, 2, 0], sizes = [10, 8, 8], strides = [1, 1, 1]} : vector<10x10x8xbf16> to vector<10x8x8xbf16>
    %11 = vector.shape_cast %10 : vector<10x8x8xbf16> to vector<80x8xbf16>
    %12 = vector.extract_strided_slice %9 {offsets = [8, 0], sizes = [64, 8], strides = [1, 1]} : vector<80x8xbf16> to vector<64x8xbf16>
    %13 = vector.extract_strided_slice %7 {offsets = [8, 0], sizes = [64, 8], strides = [1, 1]} : vector<80x8xbf16> to vector<64x8xbf16>
    %14 = vector.extract_strided_slice %9 {offsets = [0, 0], sizes = [64, 8], strides = [1, 1]} : vector<80x8xbf16> to vector<64x8xbf16>
    %15 = vector.extract_strided_slice %7 {offsets = [0, 0], sizes = [64, 8], strides = [1, 1]} : vector<80x8xbf16> to vector<64x8xbf16>
    %16 = tpu.concatenate %12, %13, %14, %15 in 1 : vector<64x8xbf16>, vector<64x8xbf16>, vector<64x8xbf16>, vector<64x8xbf16> -> vector<64x32xbf16>
    %c0_4 = arith.constant 0 : index
    %c0_5 = arith.constant 0 : index
    %c0_6 = arith.constant 0 : index
    %c0_7 = arith.constant 0 : index
    %17 = vector.load %arg2[%c0_4, %c0_5, %c0_6, %c0_7] : memref<2x2x32x3xbf16, #tpu.memory_space<vmem>>, vector<1x1x32x3xbf16>
    %18 = vector.shape_cast %17 : vector<1x1x32x3xbf16> to vector<32x3xbf16>
    %cst_8 = arith.constant dense<0.000000e+00> : vector<64x3xf32>
    %19 = tpu.matmul %16, %18, %cst_8 {dimension_numbers = #tpu.dot_dimension_numbers<[1], [0], [0], [1], [0, 0, 1, 1], [], []>} : vector<64x32xbf16>, vector<32x3xbf16>, vector<64x3xf32> -> vector<64x3xf32>
    %20 = arith.negf %19 : vector<64x3xf32>
    %21 = math.exp %20 : vector<64x3xf32>
    %cst_9 = arith.constant 1.000000e+00 : f32
    %22 = vector.broadcast %cst_9 : f32 to vector<64x3xf32>
    %23 = arith.addf %22, %21 : vector<64x3xf32>
    %24 = arith.divf %22, %23 : vector<64x3xf32>
    %25 = vector.extract_strided_slice %11 {offsets = [8, 0], sizes = [64, 8], strides = [1, 1]} : vector<80x8xbf16> to vector<64x8xbf16>
    %26 = vector.extract_strided_slice %11 {offsets = [0, 0], sizes = [64, 8], strides = [1, 1]} : vector<80x8xbf16> to vector<64x8xbf16>
    %27 = tpu.concatenate %12, %25, %14, %26 in 1 : vector<64x8xbf16>, vector<64x8xbf16>, vector<64x8xbf16>, vector<64x8xbf16> -> vector<64x32xbf16>
    %c0_10 = arith.constant 0 : index
    %c1 = arith.constant 1 : index
    %c0_11 = arith.constant 0 : index
    %c0_12 = arith.constant 0 : index
    %28 = vector.load %arg2[%c0_10, %c1, %c0_11, %c0_12] : memref<2x2x32x3xbf16, #tpu.memory_space<vmem>>, vector<1x1x32x3xbf16>
    %29 = vector.shape_cast %28 : vector<1x1x32x3xbf16> to vector<32x3xbf16>
    %cst_13 = arith.constant dense<0.000000e+00> : vector<64x3xf32>
    %30 = tpu.matmul %27, %29, %cst_13 {dimension_numbers = #tpu.dot_dimension_numbers<[1], [0], [0], [1], [0, 0, 1, 1], [], []>} : vector<64x32xbf16>, vector<32x3xbf16>, vector<64x3xf32> -> vector<64x3xf32>
    %31 = arith.negf %30 : vector<64x3xf32>
    %32 = math.exp %31 : vector<64x3xf32>
    %cst_14 = arith.constant 1.000000e+00 : f32
    %33 = vector.broadcast %cst_14 : f32 to vector<64x3xf32>
    %34 = arith.addf %33, %32 : vector<64x3xf32>
    %35 = arith.divf %33, %34 : vector<64x3xf32>
    %36 = tpu.concatenate %24, %35 in 1 : vector<64x3xf32>, vector<64x3xf32> -> vector<64x6xf32>
    %37 = vector.shape_cast %36 : vector<64x6xf32> to vector<8x8x6xf32>
    %38 = vector.extract_strided_slice %9 {offsets = [16, 0], sizes = [64, 8], strides = [1, 1]} : vector<80x8xbf16> to vector<64x8xbf16>
    %39 = vector.extract_strided_slice %7 {offsets = [16, 0], sizes = [64, 8], strides = [1, 1]} : vector<80x8xbf16> to vector<64x8xbf16>
    %40 = tpu.concatenate %12, %13, %38, %39 in 1 : vector<64x8xbf16>, vector<64x8xbf16>, vector<64x8xbf16>, vector<64x8xbf16> -> vector<64x32xbf16>
    %c1_15 = arith.constant 1 : index
    %c0_16 = arith.constant 0 : index
    %c0_17 = arith.constant 0 : index
    %c0_18 = arith.constant 0 : index
    %41 = vector.load %arg2[%c1_15, %c0_16, %c0_17, %c0_18] : memref<2x2x32x3xbf16, #tpu.memory_space<vmem>>, vector<1x1x32x3xbf16>
    %42 = vector.shape_cast %41 : vector<1x1x32x3xbf16> to vector<32x3xbf16>
    %cst_19 = arith.constant dense<0.000000e+00> : vector<64x3xf32>
    %43 = tpu.matmul %40, %42, %cst_19 {dimension_numbers = #tpu.dot_dimension_numbers<[1], [0], [0], [1], [0, 0, 1, 1], [], []>} : vector<64x32xbf16>, vector<32x3xbf16>, vector<64x3xf32> -> vector<64x3xf32>
    %44 = arith.negf %43 : vector<64x3xf32>
    %45 = math.exp %44 : vector<64x3xf32>
    %cst_20 = arith.constant 1.000000e+00 : f32
    %46 = vector.broadcast %cst_20 : f32 to vector<64x3xf32>
    %47 = arith.addf %46, %45 : vector<64x3xf32>
    %48 = arith.divf %46, %47 : vector<64x3xf32>
    %49 = vector.extract_strided_slice %11 {offsets = [16, 0], sizes = [64, 8], strides = [1, 1]} : vector<80x8xbf16> to vector<64x8xbf16>
    %50 = tpu.concatenate %12, %25, %38, %49 in 1 : vector<64x8xbf16>, vector<64x8xbf16>, vector<64x8xbf16>, vector<64x8xbf16> -> vector<64x32xbf16>
    %c1_21 = arith.constant 1 : index
    %c1_22 = arith.constant 1 : index
    %c0_23 = arith.constant 0 : index
    %c0_24 = arith.constant 0 : index
    %51 = vector.load %arg2[%c1_21, %c1_22, %c0_23, %c0_24] : memref<2x2x32x3xbf16, #tpu.memory_space<vmem>>, vector<1x1x32x3xbf16>
    %52 = vector.shape_cast %51 : vector<1x1x32x3xbf16> to vector<32x3xbf16>
    %cst_25 = arith.constant dense<0.000000e+00> : vector<64x3xf32>
    %53 = tpu.matmul %50, %52, %cst_25 {dimension_numbers = #tpu.dot_dimension_numbers<[1], [0], [0], [1], [0, 0, 1, 1], [], []>} : vector<64x32xbf16>, vector<32x3xbf16>, vector<64x3xf32> -> vector<64x3xf32>
    %54 = arith.negf %53 : vector<64x3xf32>
    %55 = math.exp %54 : vector<64x3xf32>
    %cst_26 = arith.constant 1.000000e+00 : f32
    %56 = vector.broadcast %cst_26 : f32 to vector<64x3xf32>
    %57 = arith.addf %56, %55 : vector<64x3xf32>
    %58 = arith.divf %56, %57 : vector<64x3xf32>
    %59 = tpu.concatenate %48, %58 in 1 : vector<64x3xf32>, vector<64x3xf32> -> vector<64x6xf32>
    %60 = vector.shape_cast %59 : vector<64x6xf32> to vector<8x8x6xf32>
    %61 = vector.shape_cast %37 : vector<8x8x6xf32> to vector<8x1x8x6xf32>
    %62 = vector.shape_cast %60 : vector<8x8x6xf32> to vector<8x1x8x6xf32>
    %63 = tpu.concatenate %61, %62 in 1 : vector<8x1x8x6xf32>, vector<8x1x8x6xf32> -> vector<8x2x8x6xf32>
    %c0_27 = arith.constant 0 : index
    %c0_28 = arith.constant 0 : index
    %c0_29 = arith.constant 0 : index
    %c0_30 = arith.constant 0 : index
    %c0_31 = arith.constant 0 : index
    %64 = vector.load %arg3[%c0_27, %c0_28, %c0_29, %c0_30, %c0_31] : memref<1x8x2x8x6xf32, #tpu.memory_space<vmem>>, vector<1x8x2x8x6xf32>
    %65 = vector.shape_cast %64 : vector<1x8x2x8x6xf32> to vector<8x2x8x6xf32>
    %66 = vector.shape_cast %63 : vector<8x2x8x6xf32> to vector<1x8x2x8x6xf32>
    tpu.vector_store %arg3[%c0_27, %c0_28, %c0_29, %c0_30, %c0_31], %66 {strides = array<i32>} : memref<1x8x2x8x6xf32, #tpu.memory_space<vmem>>, vector<1x8x2x8x6xf32>,
    return
  }
  func.func @transform_0(%arg0: i32) -> (i32, i32, i32, i32) {
    %c0_i32 = arith.constant 0 : i32
    %c0_i32_0 = arith.constant 0 : i32
    %c0_i32_1 = arith.constant 0 : i32
    %c0_i32_2 = arith.constant 0 : i32
    return %arg0, %c0_i32, %c0_i32_0, %c0_i32_1 : i32, i32, i32, i32
  }
  func.func @transform_1(%arg0: i32) -> (i32, i32, i32, i32) {
    %c0_i32 = arith.constant 0 : i32
    %c0_i32_0 = arith.constant 0 : i32
    %c0_i32_1 = arith.constant 0 : i32
    %c0_i32_2 = arith.constant 0 : i32
    %c0_i32_3 = arith.constant 0 : i32
    return %c0_i32, %c0_i32_0, %c0_i32_1, %c0_i32_2 : i32, i32, i32, i32
  }
  func.func @transform_2(%arg0: i32) -> (i32, i32, i32, i32, i32) {
    %c0_i32 = arith.constant 0 : i32
    %c0_i32_0 = arith.constant 0 : i32
    %c0_i32_1 = arith.constant 0 : i32
    %c0_i32_2 = arith.constant 0 : i32
    %c0_i32_3 = arith.constant 0 : i32
    return %arg0, %c0_i32, %c0_i32_0, %c0_i32_1, %c0_i32_2 : i32, i32, i32, i32, i32
  }
}

</mosaic_0001>

<llo_original>
// kernel: dcgan_g_nobn_forward.3
$region0: #{dcgan_g_nobn_forward.3}
  #allocation0 [shape = 'u32[]', space=smem, size = 0x4, offset = 0x4, fixed_abs, tag = 'smem constant byte address 0x4 - core index']
  #allocation1 [shape = 'u32[144,128]{1,0:T(1,128)}', space=vmem, size = 0x12000, scoped, tag = 'internal scratch']
  %s0 = inlined_call_operand.hbm [shape: bf16[2,8], index: 0, kind: input, shape index: {}]
  %s1 = inlined_call_operand.hbm [shape: bf16[8,256], index: 1, kind: input, shape index: {}]
  %s2 = inlined_call_operand.hbm [shape: bf16[2,256], index: 2, kind: output, shape index: {}]
  %s3 = sld [smem:[#allocation0]]
  $region26: #{dcgan_g_nobn_forward.3} parent=0
    _
  %s5 = ssub.s32 1, %s3
  %s6 = scalar_select 0, %s5, %s3
  $region1: #{dcgan_g_nobn_forward.3} parent=0
    #allocation2 [shape = 'u8[512]{0}', space=vmem, size = 0x400, scoped, tag = 'input window, operand 0, single buffered']
    #allocation3 [shape = 's32[1]{0}', space=sflag, size = 0x4, scoped, tag = 'scoped memory for dcgan_g_nobn_forward.3']
    #allocation4 [shape = 's32[1]{0}', space=sflag, size = 0x4, scoped, tag = 'scoped memory for dcgan_g_nobn_forward.3']
    #allocation5 [shape = 'u8[4096]{0}', space=vmem, size = 0x1000, scoped, tag = 'input window, operand 1, single buffered']
    #allocation6 [shape = 's32[1]{0}', space=sflag, size = 0x4, scoped, tag = 'scoped memory for dcgan_g_nobn_forward.3']
    #allocation7 [shape = 'u8[1024]{0}', space=vmem, size = 0x400, scoped, tag = 'output window, operand 0, single buffered']
    %7 = vsyncpa [#allocation3], 0
    %8 = vsyncpa [#allocation6], 0
    %9 = vsyncpa [#allocation4], 0
    // Predicated region
    $region2: #{dcgan_g_nobn_forward.3} parent=1 // pred_check
      _
    $region3: #{dcgan_g_nobn_forward.3} parent=1 // pred_check_branch
      %11 = sbr.rel (0) target = $region5
    $region4: #{dcgan_g_nobn_forward.3} parent=1 // pred_region
      %s13 = ssub.s32 16, 16
      %14 = vsyncadd [#allocation3], %s13
      %s16 = sshll.u32 [#allocation2], 4
      %s17 = int_to_ptr.vmem [resolvable:$true] %s16
      %19 = dma.hbm_to_vmem [thread:$0]  %s0, 16, %s17, [#allocation3]
    $region5: #{dcgan_g_nobn_forward.3} parent=1 // pred_fallthru
      _
    // Predicated region
    $region6: #{dcgan_g_nobn_forward.3} parent=1 // pred_check
      _
    $region7: #{dcgan_g_nobn_forward.3} parent=1 // pred_check_branch
      %21 = sbr.rel (0) target = $region9
    $region8: #{dcgan_g_nobn_forward.3} parent=1 // pred_region
      %s23 = ssub.s32 128, 128
      %24 = vsyncadd [#allocation6], %s23
      %s26 = sshll.u32 [#allocation5], 4
      %s27 = int_to_ptr.vmem [resolvable:$true] %s26
      %29 = dma.hbm_to_vmem [thread:$0]  %s1, 128, %s27, [#allocation6]
    $region9: #{dcgan_g_nobn_forward.3} parent=1 // pred_fallthru
      _
    // Predicated region
    $region10: #{dcgan_g_nobn_forward.3} parent=1 // pred_check
      _
    $region11: #{dcgan_g_nobn_forward.3} parent=1 // pred_check_branch
      %31 = sbr.rel (0) target = $region13
    $region12: #{dcgan_g_nobn_forward.3} parent=1 // pred_region
      %32 = dma.done [#allocation3], 16
    $region13: #{dcgan_g_nobn_forward.3} parent=1 // pred_fallthru
      _
    // Predicated region
    $region14: #{dcgan_g_nobn_forward.3} parent=1 // pred_check
      _
    $region15: #{dcgan_g_nobn_forward.3} parent=1 // pred_check_branch
      %34 = sbr.rel (0) target = $region17
    $region16: #{dcgan_g_nobn_forward.3} parent=1 // pred_region
      %35 = dma.done [#allocation6], 128
    $region17: #{dcgan_g_nobn_forward.3} parent=1 // pred_fallthru
      _
    %v37 = vld [vmem:[#allocation2] sm:$0x1]
    %v38 = vld [vmem:[#allocation5] sm:$0xff]
    %v40 = vunpack.c.l.b16 %v38
    %v41 = vunpack.c.h.b16 %v38
    %v42 = vpack.c.b16 %v40, %v40
    %v43 = vpack.c.b16 %v41, %v41
    %vm44 = vcmask 64512
    %v46 = vsel %vm44, %v37, 0
    %vm48 = vcmask 1043456
    %v50 = vsel %vm48, %v42, 0
    %v53 = vsel %vm48, %v43, 0
    %55 = vmatprep.subr.bf16.mxu0 %v53
    %56 = vmatpush1.bf16.msra.mxu0 %v50
    %57 = vmatprep.subr.bf16.mxu0 0
    %58 = vmatpush1.bf16.msra.mxu0 0
    %59 = vmatprep.subr.bf16.mxu0 0
    %60 = vmatpush1.bf16.msra.mxu0 0
    %61 = vmatprep.subr.bf16.mxu0 0
    %62 = vmatpush1.bf16.msra.mxu0 0
    %63 = vmatprep.subr.bf16.mxu0 0
    %64 = vmatpush1.bf16.msra.mxu0 0
    %65 = vmatprep.subr.bf16.mxu0 0
    %66 = vmatpush1.bf16.msra.mxu0 0
    %67 = vmatprep.subr.bf16.mxu0 0
    %68 = vmatpush1.bf16.msra.mxu0 0
    %69 = vmatprep.subr.bf16.mxu0 0
    %70 = vmatpush1.bf16.msra.mxu0 0
    %71 = vmatprep.subr.bf16.mxu0 0
    %72 = vmatpush1.bf16.msra.mxu0 0
    %73 = vmatprep.subr.bf16.mxu0 0
    %74 = vmatpush1.bf16.msra.mxu0 0
    %75 = vmatprep.subr.bf16.mxu0 0
    %76 = vmatpush1.bf16.msra.mxu0 0
    %77 = vmatprep.subr.bf16.mxu0 0
    %78 = vmatpush1.bf16.msra.mxu0 0
    %79 = vmatprep.subr.bf16.mxu0 0
    %80 = vmatpush1.bf16.msra.mxu0 0
    %81 = vmatprep.subr.bf16.mxu0 0
    %82 = vmatpush1.bf16.msra.mxu0 0
    %83 = vmatprep.subr.bf16.mxu0 0
    %84 = vmatpush1.bf16.msra.mxu0 0
    %85 = vmatprep.subr.bf16.mxu0 0
    %86 = vmatpush1.bf16.msra.mxu0 0
    %87 = vmatprep.mubr.bf16.mxu0 0
    %88 = vmatmul.mubr.bf16.gmra.mrb[0].mxu0 %v46
    %v89 = vpop.f32.mrb[0].mxu0
    %v90 = vadd.f32 0.0, %v89
    %v91 = vpop.f32.mrb[0].mxu0
    %v92 = vadd.f32 0.0, %v91
    %v93 = vpop.f32.mrb[0].mxu0
    %v94 = vpop.f32.mrb[0].mxu0
    %95 = vdwg.mxu0
    %v96 = vmax.f32 %v90, 0.0
    %v97 = vmax.f32 %v92, 0.0
    %v98 = vpack.c.bf16 %v96, %v96
    %v99 = vpack.c.bf16 %v97, %v97
    %v102 = vcombine.low %v98, %v99
    %v104 = vunpack.c.l.s4 1966171168
    %v105 = vunpack.c.0.s8 %v104
    %v106 = vlaneseq
    %v107 = vshrl.u32 %v106, 7
    %v108 = vsub.s32 %v105, %v107
    %v109 = vrot.slane %v102, %v108
    %v111 = vunpack.c.l.s4 1966171168
    %v112 = vunpack.c.0.s8 %v111
    %v113 = vlaneseq
    %v114 = vshrl.u32 %v113, 7
    %v115 = vsub.s32 %v112, %v114
    %v116 = vrot.slane %v109, %v115
    %118 = vst [vmem:[#allocation7] sm:$0x3] %v116
    // Predicated region
    $region18: #{dcgan_g_nobn_forward.3} parent=1 // pred_check
      _
    $region19: #{dcgan_g_nobn_forward.3} parent=1 // pred_check_branch
      %120 = sbr.rel (0) target = $region21
    $region20: #{dcgan_g_nobn_forward.3} parent=1 // pred_region
      %s122 = ssub.s32 32, 32
      %123 = vsyncadd [#allocation4], %s122
      %s125 = sshll.u32 [#allocation7], 4
      %s126 = int_to_ptr.vmem [resolvable:$true] %s125
      %128 = dma.vmem_to_hbm [thread:$0]  %s126, 32, %s2, [#allocation4]
    $region21: #{dcgan_g_nobn_forward.3} parent=1 // pred_fallthru
      _
    // Predicated region
    $region22: #{dcgan_g_nobn_forward.3} parent=1 // pred_check
      _
    $region23: #{dcgan_g_nobn_forward.3} parent=1 // pred_check_branch
      %130 = sbr.rel (0) target = $region25
    $region24: #{dcgan_g_nobn_forward.3} parent=1 // pred_region
      %131 = dma.done [#allocation4], 32
    $region25: #{dcgan_g_nobn_forward.3} parent=1 // pred_fallthru
      _
    %132 = vsyncpa [#allocation3], 1
    %133 = vsyncpa [#allocation6], 1
    %134 = vsyncpa [#allocation4], 1

// kernel: dcgan_g_nobn_forward.4
$region0: #{dcgan_g_nobn_forward.4}
  #allocation0 [shape = 'u32[]', space=smem, size = 0x4, offset = 0x4, fixed_abs, tag = 'smem constant byte address 0x4 - core index']
  #allocation1 [shape = 'u32[144,128]{1,0:T(1,128)}', space=vmem, size = 0x12000, scoped, tag = 'internal scratch']
  %s0 = inlined_call_operand.hbm [shape: bf16[2,4,4,16], index: 0, kind: input, shape index: {}]
  %s1 = inlined_call_operand.hbm [shape: bf16[2,2,64,8], index: 1, kind: input, shape index: {}]
  %s2 = inlined_call_operand.hbm [shape: bf16[2,4,2,4,16], index: 2, kind: output, shape index: {}]
  %s3 = sld [smem:[#allocation0]]
  $region49: #{dcgan_g_nobn_forward.4} parent=0
    _
  %s5 = ssub.s32 1, %s3
  %s6 = scalar_select 0, %s5, %s3
  $region1: #{dcgan_g_nobn_forward.4} parent=0
    #allocation2 [shape = 'u8[8192]{0}', space=vmem, size = 0x2000, scoped, tag = 'input window, operand 0']
    #allocation3 [shape = 's32[2]{0}', space=sflag, size = 0x8, scoped, tag = 'scoped memory for dcgan_g_nobn_forward.4']
    #allocation4 [shape = 's32[2]{0}', space=sflag, size = 0x8, scoped, tag = 'scoped memory for dcgan_g_nobn_forward.4']
    #allocation5 [shape = 'u8[65536]{0}', space=vmem, size = 0x10000, scoped, tag = 'input window, operand 1, single buffered']
    #allocation6 [shape = 's32[1]{0}', space=sflag, size = 0x4, scoped, tag = 'scoped memory for dcgan_g_nobn_forward.4']
    #allocation7 [shape = 'u8[16384]{0}', space=vmem, size = 0x4000, scoped, tag = 'output window, operand 0']
    %7 = vsyncpa [#allocation3], 0
    %s8 = scalar_lea.sflag [#allocation3], 1
    %9 = vsyncpa %s8, 0
    %10 = vsyncpa [#allocation6], 0
    %11 = vsyncpa [#allocation4], 0
    %s12 = scalar_lea.sflag [#allocation4], 1
    %13 = vsyncpa %s12, 0
    loop: start=0, step=1, limit=4
    $region2: #{dcgan_g_nobn_forward.4} parent=1 // loop_pre_header
      _
    $region3: #{dcgan_g_nobn_forward.4} parent=1 // loop_header
      %s15 = sphi 0, %s19
      %p16 = scmp.ge.s32.totalorder %s15, 4
      %s25 = sphi 0, %s27
      %s28 = sphi 0, %s25
      %s29 = sphi 0, %s28
      %s45 = sphi 0, %s29
      %s49 = sphi 0, %s49
      %s51 = sphi 0, %s49
      %s52 = sphi 0, %s51
      %s66 = sphi 0, %s52
      %s72 = sphi 0, %s74
      %s75 = sphi 0, %s72
      %s76 = sphi 0, %s75
      %s92 = sphi 0, %s76
    $region4: #{dcgan_g_nobn_forward.4} parent=1 // loop_header_branch
      %18 = sbr.rel (%p16) target = $region8
    $region5: #{dcgan_g_nobn_forward.4} parent=1 // loop_body
      %s20 = ssub.s32 %s15, 1
      %s21 = ssub.s32 %s15, 2
      %s22 = sadd.s32 %s15, 1
      %s23 = ssub.s32 %s15, %s22
      %p24 = scmp.eq.s32.totalorder %s23, 0
      %s26 = sadd.s32 %s25, 1
      %s27 = scalar_select %p24, %s25, %s26
      %p30 = pneg %p24
      %p31 = scmp.eq.s32.totalorder %s15, 1
      %p32 = por %p30, %p31
      %p33 = scmp.ne.s32.totalorder %s25, %s28
      %p34 = scmp.eq.s32.totalorder %s15, 0
      %p35 = por %p33, %p34
      %p36 = scmp.ne.s32.totalorder %s25, %s28
      %p37 = scmp.eq.s32.totalorder %s20, 1
      %p38 = por %p36, %p37
      %p39 = scmp.ne.s32.totalorder %s28, %s29
      %p40 = scmp.eq.s32.totalorder %s20, 0
      %p41 = por %p39, %p40
      %p42 = scmp.ne.s32.totalorder %s28, %s29
      %p43 = scmp.eq.s32.totalorder %s21, 1
      %p44 = por %p42, %p43
      %p46 = scmp.ne.s32.totalorder %s29, %s45
      %p47 = scmp.eq.s32.totalorder %s21, 0
      %p48 = por %p46, %p47
      %s50 = sadd.s32 %s49, 1
      %p53 = scmp.eq.s32.totalorder %s15, 1
      %p54 = scmp.ne.s32.totalorder %s49, %s51
      %p55 = scmp.eq.s32.totalorder %s15, 0
      %p56 = por %p54, %p55
      %p57 = scmp.ne.s32.totalorder %s49, %s51
      %p58 = scmp.eq.s32.totalorder %s20, 1
      %p59 = por %p57, %p58
      %p60 = scmp.ne.s32.totalorder %s51, %s52
      %p61 = scmp.eq.s32.totalorder %s20, 0
      %p62 = por %p60, %p61
      %p63 = scmp.ne.s32.totalorder %s51, %s52
      %p64 = scmp.eq.s32.totalorder %s21, 1
      %p65 = por %p63, %p64
      %p67 = scmp.ne.s32.totalorder %s52, %s66
      %p68 = scmp.eq.s32.totalorder %s21, 0
      %p69 = por %p67, %p68
      %s70 = ssub.s32 %s15, %s22
      %p71 = scmp.eq.s32.totalorder %s70, 0
      %s73 = sadd.s32 %s72, 1
      %s74 = scalar_select %p71, %s72, %s73
      %p77 = pneg %p71
      %p78 = scmp.eq.s32.totalorder %s15, 1
      %p79 = por %p77, %p78
      %p80 = scmp.ne.s32.totalorder %s72, %s75
      %p81 = scmp.eq.s32.totalorder %s15, 0
      %p82 = por %p80, %p81
      %p83 = scmp.ne.s32.totalorder %s72, %s75
      %p84 = scmp.eq.s32.totalorder %s20, 1
      %p85 = por %p83, %p84
      %p86 = scmp.ne.s32.totalorder %s75, %s76
      %p87 = scmp.eq.s32.totalorder %s20, 0
      %p88 = por %p86, %p87
      %p89 = scmp.ne.s32.totalorder %s75, %s76
      %p90 = scmp.eq.s32.totalorder %s21, 1
      %p91 = por %p89, %p90
      %p93 = scmp.ne.s32.totalorder %s76, %s92
      %p94 = scmp.eq.s32.totalorder %s21, 0
      %p95 = por %p93, %p94
      %p96 = scmp.le.s32.totalorder 1, %s15
      %p97 = scmp.lt.s32.totalorder %s15, 3
      %p98 = pnand %p96, %p97
      %p99 = pneg %p98
      // Predicated region
      $region9: #{dcgan_g_nobn_forward.4} parent=5 // pred_check
        _
      $region10: #{dcgan_g_nobn_forward.4} parent=5 // pred_check_branch
        %101 = sbr.rel (%p98) target = $region12
      $region11: #{dcgan_g_nobn_forward.4} parent=5 // pred_region
        %s102 = ssub.s32 %s15, 1
        // Predicated region
        $region13: #{dcgan_g_nobn_forward.4} parent=11 // pred_check
          %p103 = pneg %p62
        $region14: #{dcgan_g_nobn_forward.4} parent=11 // pred_check_branch
          %105 = sbr.rel (%p103) target = $region16
        $region15: #{dcgan_g_nobn_forward.4} parent=11 // pred_region
          %s107 = ssub.s32 2048, 2048
          %108 = vsyncadd [#allocation6], %s107
          %s109 = sshll.u32 [#allocation5], 4
          %s110 = int_to_ptr.vmem [resolvable:$true] %s109
          %115 = dma.hbm_to_vmem [thread:$0]  %s1, 2048, %s110, [#allocation6], 64, 64, 4
        $region16: #{dcgan_g_nobn_forward.4} parent=11 // pred_fallthru
          _
      $region12: #{dcgan_g_nobn_forward.4} parent=5 // pred_fallthru
        _
      %p116 = scmp.lt.s32.totalorder %s15, 2
      // Predicated region
      $region17: #{dcgan_g_nobn_forward.4} parent=5 // pred_check
        %p117 = pneg %p116
      $region18: #{dcgan_g_nobn_forward.4} parent=5 // pred_check_branch
        %119 = sbr.rel (%p117) target = $region20
      $region19: #{dcgan_g_nobn_forward.4} parent=5 // pred_region
        // Predicated region
        $region21: #{dcgan_g_nobn_forward.4} parent=19 // pred_check
          %p120 = pneg %p35
        $region22: #{dcgan_g_nobn_forward.4} parent=19 // pred_check_branch
          %122 = sbr.rel (%p120) target = $region24
        $region23: #{dcgan_g_nobn_forward.4} parent=19 // pred_region
          %s123 = sand.u32 %s25, 1
          %s124 = scalar_lea.sflag [#allocation3], %s123
          %s125 = sand.u32 %s25, 1
          %s126 = smul.addr %s125, 8
          %s127 = scalar_lea.vmem [#allocation2], %s126
          %s129 = ssub.s32 128, 128
          %130 = vsyncadd %s124, %s129
          %s131 = smul.addr %s15, 4
          %s132 = smul.addr %s131, 32
          %s133 = scalar_lea.hbm %s0, %s132
          %s134 = sshll.u32 %s127, 4
          %s135 = int_to_ptr.vmem [resolvable:$true] %s134
          %140 = dma.hbm_to_vmem [thread:$0]  %s133, 128, %s135, %s124, 32, 32, 2
        $region24: #{dcgan_g_nobn_forward.4} parent=19 // pred_fallthru
          _
      $region20: #{dcgan_g_nobn_forward.4} parent=5 // pred_fallthru
        _
      %p141 = scmp.le.s32.totalorder 1, %s15
      %p142 = scmp.lt.s32.totalorder %s15, 3
      %p143 = pnand %p141, %p142
      %p144 = pneg %p143
      // Predicated region
      $region25: #{dcgan_g_nobn_forward.4} parent=5 // pred_check
        _
      $region26: #{dcgan_g_nobn_forward.4} parent=5 // pred_check_branch
        %146 = sbr.rel (%p143) target = $region28
      $region27: #{dcgan_g_nobn_forward.4} parent=5 // pred_region
        %s147 = ssub.s32 %s15, 1
        %s148 = sand.u32 %s28, 1
        %s149 = scalar_lea.sflag [#allocation3], %s148
        %s150 = sand.u32 %s28, 1
        %s151 = smul.addr %s150, 8
        %s152 = scalar_lea.vmem [#allocation2], %s151
        // Predicated region
        $region29: #{dcgan_g_nobn_forward.4} parent=27 // pred_check
          %p153 = pneg %p41
        $region30: #{dcgan_g_nobn_forward.4} parent=27 // pred_check_branch
          %155 = sbr.rel (%p153) target = $region32
        $region31: #{dcgan_g_nobn_forward.4} parent=27 // pred_region
          %156 = dma.done %s149, 128
        $region32: #{dcgan_g_nobn_forward.4} parent=27 // pred_fallthru
          _
        // Predicated region
        $region33: #{dcgan_g_nobn_forward.4} parent=27 // pred_check
          %p157 = pneg %p62
        $region34: #{dcgan_g_nobn_forward.4} parent=27 // pred_check_branch
          %159 = sbr.rel (%p157) target = $region36
        $region35: #{dcgan_g_nobn_forward.4} parent=27 // pred_region
          %160 = dma.done [#allocation6], 2048
        $region36: #{dcgan_g_nobn_forward.4} parent=27 // pred_fallthru
          _
        %s161 = sand.u32 %s28, 1
        %s162 = scalar_lea.sflag [#allocation3], %s161
        %s163 = sand.u32 %s28, 1
        %s164 = smul.addr %s163, 8
        %s165 = scalar_lea.vmem [#allocation2], %s164
        %p166 = pneg %p41
        %p167 = pneg %p38
        %p168 = pneg %p62
        %p169 = pneg %p59
        %p170 = pneg %p88
        %p171 = pneg %p85
        %s172 = sand.u32 %s75, 1
        %s173 = scalar_lea.sflag [#allocation4], %s172
        %s174 = sand.u32 %s75, 1
        %s175 = smul.addr %s174, 16
        %s176 = scalar_lea.vmem [#allocation7], %s175
        %v178 = vld [vmem:[%s152] sm:$0x3]
        %v179 = vld [vmem:[%s152 + $0x2] sm:$0x3]
        %v180 = vld [vmem:[%s152 + $0x4] sm:$0x3]
        %v181 = vld [vmem:[%s152 + $0x6] sm:$0x3]
        %v183 = vshrl.u32 0, 16
        %v185 = vrot.slane %v183, 7
        %v186 = vshll.u32 0, 16
        %v188 = vor.u32 %v185, %v186
        %v190 = vshrl.u32 %v178, 16
        %v192 = vrot.slane %v190, 7
        %v193 = vshll.u32 %v178, 16
        %v195 = vor.u32 %v192, %v193
        %v197 = vshrl.u32 %v179, 16
        %v199 = vrot.slane %v197, 7
        %v200 = vshll.u32 %v179, 16
        %v202 = vor.u32 %v199, %v200
        %v204 = vshrl.u32 %v180, 16
        %v206 = vrot.slane %v204, 7
        %v207 = vshll.u32 %v180, 16
        %v209 = vor.u32 %v206, %v207
        %v211 = vshrl.u32 %v181, 16
        %v213 = vrot.slane %v211, 7
        %v214 = vshll.u32 %v181, 16
        %v216 = vor.u32 %v213, %v214
        %vm222 = vcmask 1040384
        %vm223 = vsmask.f32 256
        %vm224 = vmand %vm222, %vm223
        %v225 = vsel %vm224, 0, %v188
        %v226 = vsel %vm224, 0, %v195
        %v227 = vsel %vm224, 0, %v202
        %v228 = vsel %vm224, 0, %v209
        %v229 = vsel %vm224, 0, %v216
        %vm230 = vcmask 1042432
        %vm231 = vsmask.f32 2304
        %vm232 = vmand %vm230, %vm231
        %v233 = vsel %vm232, %v225, 0
        %v234 = vsel %vm232, %v226, 0
        %v235 = vsel %vm232, %v227, 0
        %v236 = vsel %vm232, %v228, 0
        %v237 = vsel %vm232, %v229, 0
        %v244 = vunpack.c.l.s4 1983009808
        %v245 = vunpack.c.0.s8 %v244
        %v246 = vlaneseq
        %v247 = vshrl.u32 %v246, 7
        %v248 = vsub.s32 %v245, %v247
        %v249 = vrot.slane %v233, %v248
        %v250 = vcombine.high %v249, %v249
        %v252 = vunpack.c.l.s4 1983009808
        %v253 = vunpack.c.0.s8 %v252
        %v254 = vlaneseq
        %v255 = vshrl.u32 %v254, 7
        %v256 = vsub.s32 %v253, %v255
        %v257 = vrot.slane %v234, %v256
        %v258 = vcombine.high %v257, %v257
        %v260 = vunpack.c.l.s4 1983009808
        %v261 = vunpack.c.0.s8 %v260
        %v262 = vlaneseq
        %v263 = vshrl.u32 %v262, 7
        %v264 = vsub.s32 %v261, %v263
        %v265 = vrot.slane %v235, %v264
        %v266 = vcombine.high %v265, %v265
        %v268 = vunpack.c.l.s4 1983009808
        %v269 = vunpack.c.0.s8 %v268
        %v270 = vlaneseq
        %v271 = vshrl.u32 %v270, 7
        %v272 = vsub.s32 %v269, %v271
        %v273 = vrot.slane %v236, %v272
        %v274 = vcombine.high %v273, %v273
        %v276 = vunpack.c.l.s4 1983009808
        %v277 = vunpack.c.0.s8 %v276
        %v278 = vlaneseq
        %v279 = vshrl.u32 %v278, 7
        %v280 = vsub.s32 %v277, %v279
        %v281 = vrot.slane %v237, %v280
        %v282 = vcombine.high %v281, %v281
        %vm283 = vsmask.f32 1280
        %vm284 = vsmask.f32 3336
        %vm285 = vmor %vm283, %vm284
        %vm286 = vsmask.f32 5392
        %vm287 = vmor %vm285, %vm286
        %vm288 = vsmask.f32 7448
        %vm289 = vmor %vm287, %vm288
        %v291 = vshrl.u32 %v249, 16
        %v293 = vrot.slane %v291, 6
        %v294 = vshll.u32 %v249, 16
        %v296 = vrot.slane %v294, 7
        %v297 = vor.u32 %v293, %v296
        %v298 = vrot.slane %v297, 2
        %v300 = vshll.u32 %v250, 16
        %v302 = vrot.slane %v300, 7
        %v303 = vsel %vm289, %v298, %v302
        %v305 = vshrl.u32 %v257, 16
        %v307 = vrot.slane %v305, 6
        %v308 = vshll.u32 %v257, 16
        %v310 = vrot.slane %v308, 7
        %v311 = vor.u32 %v307, %v310
        %v312 = vrot.slane %v311, 2
        %v314 = vshll.u32 %v258, 16
        %v316 = vrot.slane %v314, 7
        %v317 = vsel %vm289, %v312, %v316
        %v319 = vshrl.u32 %v265, 16
        %v321 = vrot.slane %v319, 6
        %v322 = vshll.u32 %v265, 16
        %v324 = vrot.slane %v322, 7
        %v325 = vor.u32 %v321, %v324
        %v326 = vrot.slane %v325, 2
        %v328 = vshll.u32 %v266, 16
        %v330 = vrot.slane %v328, 7
        %v331 = vsel %vm289, %v326, %v330
        %v333 = vshrl.u32 %v273, 16
        %v335 = vrot.slane %v333, 6
        %v336 = vshll.u32 %v273, 16
        %v338 = vrot.slane %v336, 7
        %v339 = vor.u32 %v335, %v338
        %v340 = vrot.slane %v339, 2
        %v342 = vshll.u32 %v274, 16
        %v344 = vrot.slane %v342, 7
        %v345 = vsel %vm289, %v340, %v344
        %v347 = vshrl.u32 %v281, 16
        %v349 = vrot.slane %v347, 6
        %v350 = vshll.u32 %v281, 16
        %v352 = vrot.slane %v350, 7
        %v353 = vor.u32 %v349, %v352
        %v354 = vrot.slane %v353, 2
        %v356 = vshll.u32 %v282, 16
        %v358 = vrot.slane %v356, 7
        %v359 = vsel %vm289, %v354, %v358
        %vm360 = vcmask 1042434
        %vm361 = vmor %vm222, %vm360
        %vm362 = vcmask 1044484
        %vm363 = vmor %vm361, %vm362
        %vm364 = vcmask 1046534
        %vm365 = vmor %vm363, %vm364
        %v366 = vrot.slane %v249, 7
        %v367 = vrot.slane %v366, 2
        %v368 = vrot.slane %v250, 7
        %v369 = vsel %vm365, %v367, %v368
        %v370 = vrot.slane %v257, 7
        %v371 = vrot.slane %v370, 2
        %v372 = vrot.slane %v258, 7
        %v373 = vsel %vm365, %v371, %v372
        %v374 = vrot.slane %v265, 7
        %v375 = vrot.slane %v374, 2
        %v376 = vrot.slane %v266, 7
        %v377 = vsel %vm365, %v375, %v376
        %v378 = vrot.slane %v273, 7
        %v379 = vrot.slane %v378, 2
        %v380 = vrot.slane %v274, 7
        %v381 = vsel %vm365, %v379, %v380
        %v382 = vrot.slane %v281, 7
        %v383 = vrot.slane %v382, 2
        %v384 = vrot.slane %v282, 7
        %v385 = vsel %vm365, %v383, %v384
        %v386 = vcombine.low %v317, %v331
        %v387 = vcombine.low %v345, %v359
        %v389 = vunpack.c.l.s4 1983009808
        %v390 = vunpack.c.0.s8 %v389
        %v391 = vlaneseq
        %v392 = vshrl.u32 %v391, 7
        %v393 = vsub.s32 %v390, %v392
        %v394 = vrot.slane %v386, %v393
        %v396 = vunpack.c.l.s4 1983009808
        %v397 = vunpack.c.0.s8 %v396
        %v398 = vlaneseq
        %v399 = vshrl.u32 %v398, 7
        %v400 = vsub.s32 %v397, %v399
        %v401 = vrot.slane %v387, %v400
        %v402 = vcombine.low %v394, %v401
        %v403 = vcombine.low %v234, %v235
        %v404 = vcombine.low %v236, %v237
        %v406 = vunpack.c.l.s4 1983009808
        %v407 = vunpack.c.0.s8 %v406
        %v408 = vlaneseq
        %v409 = vshrl.u32 %v408, 7
        %v410 = vsub.s32 %v407, %v409
        %v411 = vrot.slane %v403, %v410
        %v413 = vunpack.c.l.s4 1983009808
        %v414 = vunpack.c.0.s8 %v413
        %v415 = vlaneseq
        %v416 = vshrl.u32 %v415, 7
        %v417 = vsub.s32 %v414, %v416
        %v418 = vrot.slane %v404, %v417
        %v419 = vcombine.low %v411, %v418
        %420 = vrot.lane.b32.xlu0 %v419, 16
        %v421 = vpop.permute.xlu0 %420
        %v422 = vcombine.low %v303, %v317
        %v423 = vcombine.low %v331, %v345
        %v425 = vunpack.c.l.s4 1983009808
        %v426 = vunpack.c.0.s8 %v425
        %v427 = vlaneseq
        %v428 = vshrl.u32 %v427, 7
        %v429 = vsub.s32 %v426, %v428
        %v430 = vrot.slane %v422, %v429
        %v432 = vunpack.c.l.s4 1983009808
        %v433 = vunpack.c.0.s8 %v432
        %v434 = vlaneseq
        %v435 = vshrl.u32 %v434, 7
        %v436 = vsub.s32 %v433, %v435
        %v437 = vrot.slane %v423, %v436
        %v438 = vcombine.low %v430, %v437
        %439 = vrot.lane.b32.xlu0 %v438, 32
        %v440 = vpop.permute.xlu0 %439
        %v441 = vcombine.low %v233, %v234
        %v442 = vcombine.low %v235, %v236
        %v444 = vunpack.c.l.s4 1983009808
        %v445 = vunpack.c.0.s8 %v444
        %v446 = vlaneseq
        %v447 = vshrl.u32 %v446, 7
        %v448 = vsub.s32 %v445, %v447
        %v449 = vrot.slane %v441, %v448
        %v451 = vunpack.c.l.s4 1983009808
        %v452 = vunpack.c.0.s8 %v451
        %v453 = vlaneseq
        %v454 = vshrl.u32 %v453, 7
        %v455 = vsub.s32 %v452, %v454
        %v456 = vrot.slane %v442, %v455
        %v457 = vcombine.low %v449, %v456
        %458 = vrot.lane.b32.xlu0 %v457, 48
        %v459 = vpop.permute.xlu0 %458
        %vm460 = vcmask 130048
        %v463 = vsel %vm460, %v402, %v421
        %vm464 = vcmask 261120
        %v466 = vsel %vm464, %v463, %v440
        %vm467 = vcmask 392192
        %v469 = vsel %vm467, %v466, %v459
        %v470 = vld [vmem:[#allocation5] sm:$0xf]
        %v471 = vld [vmem:[#allocation5 + $0x4] sm:$0xf]
        %v472 = vld [vmem:[#allocation5 + $0x8] sm:$0xf]
        %v473 = vld [vmem:[#allocation5 + $0xc] sm:$0xf]
        %v474 = vld [vmem:[#allocation5 + $0x10] sm:$0xf]
        %v475 = vld [vmem:[#allocation5 + $0x14] sm:$0xf]
        %v476 = vld [vmem:[#allocation5 + $0x18] sm:$0xf]
        %v477 = vld [vmem:[#allocation5 + $0x1c] sm:$0xf]
        %v486 = vunpack.c.l.b16 %v470
        %v487 = vunpack.c.l.b16 %v471
        %v488 = vunpack.c.l.b16 %v472
        %v489 = vunpack.c.l.b16 %v473
        %v490 = vunpack.c.l.b16 %v474
        %v491 = vunpack.c.l.b16 %v475
        %v492 = vunpack.c.l.b16 %v476
        %v493 = vunpack.c.l.b16 %v477
        %v494 = vpack.c.b16 %v487, %v486
        %v495 = vpack.c.b16 %v489, %v488
        %v496 = vpack.c.b16 %v491, %v490
        %v497 = vpack.c.b16 %v493, %v492
        %vm502 = vcmask 523264
        %v503 = vsel %vm502, %v469, 0
        %505 = vmatprep.subr.bf16.mxu0 0
        %506 = vmatpush1.bf16.msra.mxu0 %v494
        %507 = vmatprep.subr.bf16.mxu0 0
        %508 = vmatpush1.bf16.msra.mxu0 %v495
        %509 = vmatprep.subr.bf16.mxu0 0
        %510 = vmatpush1.bf16.msra.mxu0 %v496
        %511 = vmatprep.subr.bf16.mxu0 0
        %512 = vmatpush1.bf16.msra.mxu0 %v497
        %513 = vmatprep.subr.bf16.mxu0 0
        %514 = vmatpush1.bf16.msra.mxu0 0
        %515 = vmatprep.subr.bf16.mxu0 0
        %516 = vmatpush1.bf16.msra.mxu0 0
        %517 = vmatprep.subr.bf16.mxu0 0
        %518 = vmatpush1.bf16.msra.mxu0 0
        %519 = vmatprep.subr.bf16.mxu0 0
        %520 = vmatpush1.bf16.msra.mxu0 0
        %521 = vmatprep.subr.bf16.mxu0 0
        %522 = vmatpush1.bf16.msra.mxu0 0
        %523 = vmatprep.subr.bf16.mxu0 0
        %524 = vmatpush1.bf16.msra.mxu0 0
        %525 = vmatprep.subr.bf16.mxu0 0
        %526 = vmatpush1.bf16.msra.mxu0 0
        %527 = vmatprep.subr.bf16.mxu0 0
        %528 = vmatpush1.bf16.msra.mxu0 0
        %529 = vmatprep.subr.bf16.mxu0 0
        %530 = vmatpush1.bf16.msra.mxu0 0
        %531 = vmatprep.subr.bf16.mxu0 0
        %532 = vmatpush1.bf16.msra.mxu0 0
        %533 = vmatprep.subr.bf16.mxu0 0
        %534 = vmatpush1.bf16.msra.mxu0 0
        %535 = vmatprep.subr.bf16.mxu0 0
        %536 = vmatpush1.bf16.msra.mxu0 0
        %537 = vmatprep.mubr.bf16.mxu0 0
        %538 = vmatmul.mubr.bf16.gmra.mrb[0].mxu0 %v503
        %v539 = vpop.f32.mrb[0].mxu0
        %v540 = vadd.f32 0.0, %v539
        %v541 = vpop.f32.mrb[0].mxu0
        %v542 = vpop.f32.mrb[0].mxu0
        %v543 = vadd.f32 0.0, %v542
        %v544 = vpop.f32.mrb[0].mxu0
        %545 = vdwg.mxu0
        %v546 = vmax.f32 %v540, 0.0
        %v547 = vmax.f32 %v543, 0.0
        %v548 = vcombine.low %v373, %v377
        %v549 = vcombine.low %v381, %v385
        %v551 = vunpack.c.l.s4 1983009808
        %v552 = vunpack.c.0.s8 %v551
        %v553 = vlaneseq
        %v554 = vshrl.u32 %v553, 7
        %v555 = vsub.s32 %v552, %v554
        %v556 = vrot.slane %v548, %v555
        %v558 = vunpack.c.l.s4 1983009808
        %v559 = vunpack.c.0.s8 %v558
        %v560 = vlaneseq
        %v561 = vshrl.u32 %v560, 7
        %v562 = vsub.s32 %v559, %v561
        %v563 = vrot.slane %v549, %v562
        %v564 = vcombine.low %v556, %v563
        %565 = vrot.lane.b32.xlu0 %v564, 16
        %v566 = vpop.permute.xlu0 %565
        %v567 = vcombine.low %v369, %v373
        %v568 = vcombine.low %v377, %v381
        %v570 = vunpack.c.l.s4 1983009808
        %v571 = vunpack.c.0.s8 %v570
        %v572 = vlaneseq
        %v573 = vshrl.u32 %v572, 7
        %v574 = vsub.s32 %v571, %v573
        %v575 = vrot.slane %v567, %v574
        %v577 = vunpack.c.l.s4 1983009808
        %v578 = vunpack.c.0.s8 %v577
        %v579 = vlaneseq
        %v580 = vshrl.u32 %v579, 7
        %v581 = vsub.s32 %v578, %v580
        %v582 = vrot.slane %v568, %v581
        %v583 = vcombine.low %v575, %v582
        %584 = vrot.lane.b32.xlu0 %v583, 48
        %v585 = vpop.permute.xlu0 %584
        %v587 = vsel %vm460, %v402, %v566
        %v588 = vsel %vm464, %v587, %v440
        %v590 = vsel %vm467, %v588, %v585
        %s591 = scalar_lea.vmem [#allocation5], 32
        %v592 = vld [vmem:[%s591] sm:$0xf]
        %v593 = vld [vmem:[%s591 + $0x4] sm:$0xf]
        %v594 = vld [vmem:[%s591 + $0x8] sm:$0xf]
        %v595 = vld [vmem:[%s591 + $0xc] sm:$0xf]
        %v596 = vld [vmem:[%s591 + $0x10] sm:$0xf]
        %v597 = vld [vmem:[%s591 + $0x14] sm:$0xf]
        %v598 = vld [vmem:[%s591 + $0x18] sm:$0xf]
        %v599 = vld [vmem:[%s591 + $0x1c] sm:$0xf]
        %v608 = vunpack.c.l.b16 %v592
        %v609 = vunpack.c.l.b16 %v593
        %v610 = vunpack.c.l.b16 %v594
        %v611 = vunpack.c.l.b16 %v595
        %v612 = vunpack.c.l.b16 %v596
        %v613 = vunpack.c.l.b16 %v597
        %v614 = vunpack.c.l.b16 %v598
        %v615 = vunpack.c.l.b16 %v599
        %v616 = vpack.c.b16 %v609, %v608
        %v617 = vpack.c.b16 %v611, %v610
        %v618 = vpack.c.b16 %v613, %v612
        %v619 = vpack.c.b16 %v615, %v614
        %v624 = vsel %vm502, %v590, 0
        %626 = vmatprep.subr.bf16.mxu0 0
        %627 = vmatpush1.bf16.msra.mxu0 %v616
        %628 = vmatprep.subr.bf16.mxu0 0
        %629 = vmatpush1.bf16.msra.mxu0 %v617
        %630 = vmatprep.subr.bf16.mxu0 0
        %631 = vmatpush1.bf16.msra.mxu0 %v618
        %632 = vmatprep.subr.bf16.mxu0 0
        %633 = vmatpush1.bf16.msra.mxu0 %v619
        %634 = vmatprep.subr.bf16.mxu0 0
        %635 = vmatpush1.bf16.msra.mxu0 0
        %636 = vmatprep.subr.bf16.mxu0 0
        %637 = vmatpush1.bf16.msra.mxu0 0
        %638 = vmatprep.subr.bf16.mxu0 0
        %639 = vmatpush1.bf16.msra.mxu0 0
        %640 = vmatprep.subr.bf16.mxu0 0
        %641 = vmatpush1.bf16.msra.mxu0 0
        %642 = vmatprep.subr.bf16.mxu0 0
        %643 = vmatpush1.bf16.msra.mxu0 0
        %644 = vmatprep.subr.bf16.mxu0 0
        %645 = vmatpush1.bf16.msra.mxu0 0
        %646 = vmatprep.subr.bf16.mxu0 0
        %647 = vmatpush1.bf16.msra.mxu0 0
        %648 = vmatprep.subr.bf16.mxu0 0
        %649 = vmatpush1.bf16.msra.mxu0 0
        %650 = vmatprep.subr.bf16.mxu0 0
        %651 = vmatpush1.bf16.msra.mxu0 0
        %652 = vmatprep.subr.bf16.mxu0 0
        %653 = vmatpush1.bf16.msra.mxu0 0
        %654 = vmatprep.subr.bf16.mxu0 0
        %655 = vmatpush1.bf16.msra.mxu0 0
        %656 = vmatprep.subr.bf16.mxu0 0
        %657 = vmatpush1.bf16.msra.mxu0 0
        %658 = vmatprep.mubr.bf16.mxu0 0
        %659 = vmatmul.mubr.bf16.gmra.mrb[0].mxu0 %v624
        %v660 = vpop.f32.mrb[0].mxu0
        %v661 = vadd.f32 0.0, %v660
        %v662 = vpop.f32.mrb[0].mxu0
        %v663 = vpop.f32.mrb[0].mxu0
        %v664 = vadd.f32 0.0, %v663
        %v665 = vpop.f32.mrb[0].mxu0
        %666 = vdwg.mxu0
        %v667 = vmax.f32 %v661, 0.0
        %v668 = vmax.f32 %v664, 0.0
        %671 = vrot.lane.b32.xlu0 %v667, 8
        %v672 = vpop.permute.xlu0 %671
        %673 = vrot.lane.b32.xlu0 %v668, 8
        %v674 = vpop.permute.xlu0 %673
        %vm677 = vcmask 64512
        %v678 = vsel %vm677, %v546, %v672
        %v679 = vsel %vm677, %v547, %v674
        %v680 = vpack.c.bf16 %v679, %v678
        %v681 = vcombine.low %v359, %v303
        %v683 = vunpack.c.l.s4 1983009808
        %v684 = vunpack.c.0.s8 %v683
        %v685 = vlaneseq
        %v686 = vshrl.u32 %v685, 7
        %v687 = vsub.s32 %v684, %v686
        %v688 = vrot.slane %v681, %v687
        %v689 = vcombine.low %v437, %v688
        %690 = vrot.lane.b32.xlu0 %v689, 32
        %v691 = vpop.permute.xlu0 %690
        %v692 = vcombine.low %v237, %v233
        %v694 = vunpack.c.l.s4 1983009808
        %v695 = vunpack.c.0.s8 %v694
        %v696 = vlaneseq
        %v697 = vshrl.u32 %v696, 7
        %v698 = vsub.s32 %v695, %v697
        %v699 = vrot.slane %v692, %v698
        %v700 = vcombine.low %v456, %v699
        %701 = vrot.lane.b32.xlu0 %v700, 48
        %v702 = vpop.permute.xlu0 %701
        %v704 = vsel %vm464, %v463, %v691
        %v706 = vsel %vm467, %v704, %v702
        %s707 = scalar_lea.vmem [#allocation5], 64
        %v708 = vld [vmem:[%s707] sm:$0xf]
        %v709 = vld [vmem:[%s707 + $0x4] sm:$0xf]
        %v710 = vld [vmem:[%s707 + $0x8] sm:$0xf]
        %v711 = vld [vmem:[%s707 + $0xc] sm:$0xf]
        %v712 = vld [vmem:[%s707 + $0x10] sm:$0xf]
        %v713 = vld [vmem:[%s707 + $0x14] sm:$0xf]
        %v714 = vld [vmem:[%s707 + $0x18] sm:$0xf]
        %v715 = vld [vmem:[%s707 + $0x1c] sm:$0xf]
        %v724 = vunpack.c.l.b16 %v708
        %v725 = vunpack.c.l.b16 %v709
        %v726 = vunpack.c.l.b16 %v710
        %v727 = vunpack.c.l.b16 %v711
        %v728 = vunpack.c.l.b16 %v712
        %v729 = vunpack.c.l.b16 %v713
        %v730 = vunpack.c.l.b16 %v714
        %v731 = vunpack.c.l.b16 %v715
        %v732 = vpack.c.b16 %v725, %v724
        %v733 = vpack.c.b16 %v727, %v726
        %v734 = vpack.c.b16 %v729, %v728
        %v735 = vpack.c.b16 %v731, %v730
        %v740 = vsel %vm502, %v706, 0
        %742 = vmatprep.subr.bf16.mxu0 0
        %743 = vmatpush1.bf16.msra.mxu0 %v732
        %744 = vmatprep.subr.bf16.mxu0 0
        %745 = vmatpush1.bf16.msra.mxu0 %v733
        %746 = vmatprep.subr.bf16.mxu0 0
        %747 = vmatpush1.bf16.msra.mxu0 %v734
        %748 = vmatprep.subr.bf16.mxu0 0
        %749 = vmatpush1.bf16.msra.mxu0 %v735
        %750 = vmatprep.subr.bf16.mxu0 0
        %751 = vmatpush1.bf16.msra.mxu0 0
        %752 = vmatprep.subr.bf16.mxu0 0
        %753 = vmatpush1.bf16.msra.mxu0 0
        %754 = vmatprep.subr.bf16.mxu0 0
        %755 = vmatpush1.bf16.msra.mxu0 0
        %756 = vmatprep.subr.bf16.mxu0 0
        %757 = vmatpush1.bf16.msra.mxu0 0
        %758 = vmatprep.subr.bf16.mxu0 0
        %759 = vmatpush1.bf16.msra.mxu0 0
        %760 = vmatprep.subr.bf16.mxu0 0
        %761 = vmatpush1.bf16.msra.mxu0 0
        %762 = vmatprep.subr.bf16.mxu0 0
        %763 = vmatpush1.bf16.msra.mxu0 0
        %764 = vmatprep.subr.bf16.mxu0 0
        %765 = vmatpush1.bf16.msra.mxu0 0
        %766 = vmatprep.subr.bf16.mxu0 0
        %767 = vmatpush1.bf16.msra.mxu0 0
        %768 = vmatprep.subr.bf16.mxu0 0
        %769 = vmatpush1.bf16.msra.mxu0 0
        %770 = vmatprep.subr.bf16.mxu0 0
        %771 = vmatpush1.bf16.msra.mxu0 0
        %772 = vmatprep.subr.bf16.mxu0 0
        %773 = vmatpush1.bf16.msra.mxu0 0
        %774 = vmatprep.mubr.bf16.mxu0 0
        %775 = vmatmul.mubr.bf16.gmra.mrb[0].mxu0 %v740
        %v776 = vpop.f32.mrb[0].mxu0
        %v777 = vadd.f32 0.0, %v776
        %v778 = vpop.f32.mrb[0].mxu0
        %v779 = vpop.f32.mrb[0].mxu0
        %v780 = vadd.f32 0.0, %v779
        %v781 = vpop.f32.mrb[0].mxu0
        %782 = vdwg.mxu0
        %v783 = vmax.f32 %v777, 0.0
        %v784 = vmax.f32 %v780, 0.0
        %v785 = vcombine.low %v385, %v369
        %v787 = vunpack.c.l.s4 1983009808
        %v788 = vunpack.c.0.s8 %v787
        %v789 = vlaneseq
        %v790 = vshrl.u32 %v789, 7
        %v791 = vsub.s32 %v788, %v790
        %v792 = vrot.slane %v785, %v791
        %v793 = vcombine.low %v582, %v792
        %794 = vrot.lane.b32.xlu0 %v793, 48
        %v795 = vpop.permute.xlu0 %794
        %v796 = vsel %vm464, %v587, %v691
        %v798 = vsel %vm467, %v796, %v795
        %s799 = scalar_lea.vmem [#allocation5], 96
        %v800 = vld [vmem:[%s799] sm:$0xf]
        %v801 = vld [vmem:[%s799 + $0x4] sm:$0xf]
        %v802 = vld [vmem:[%s799 + $0x8] sm:$0xf]
        %v803 = vld [vmem:[%s799 + $0xc] sm:$0xf]
        %v804 = vld [vmem:[%s799 + $0x10] sm:$0xf]
        %v805 = vld [vmem:[%s799 + $0x14] sm:$0xf]
        %v806 = vld [vmem:[%s799 + $0x18] sm:$0xf]
        %v807 = vld [vmem:[%s799 + $0x1c] sm:$0xf]
        %v816 = vunpack.c.l.b16 %v800
        %v817 = vunpack.c.l.b16 %v801
        %v818 = vunpack.c.l.b16 %v802
        %v819 = vunpack.c.l.b16 %v803
        %v820 = vunpack.c.l.b16 %v804
        %v821 = vunpack.c.l.b16 %v805
        %v822 = vunpack.c.l.b16 %v806
        %v823 = vunpack.c.l.b16 %v807
        %v824 = vpack.c.b16 %v817, %v816
        %v825 = vpack.c.b16 %v819, %v818
        %v826 = vpack.c.b16 %v821, %v820
        %v827 = vpack.c.b16 %v823, %v822
        %v832 = vsel %vm502, %v798, 0
        %834 = vmatprep.subr.bf16.mxu0 0
        %835 = vmatpush1.bf16.msra.mxu0 %v824
        %836 = vmatprep.subr.bf16.mxu0 0
        %837 = vmatpush1.bf16.msra.mxu0 %v825
        %838 = vmatprep.subr.bf16.mxu0 0
        %839 = vmatpush1.bf16.msra.mxu0 %v826
        %840 = vmatprep.subr.bf16.mxu0 0
        %841 = vmatpush1.bf16.msra.mxu0 %v827
        %842 = vmatprep.subr.bf16.mxu0 0
        %843 = vmatpush1.bf16.msra.mxu0 0
        %844 = vmatprep.subr.bf16.mxu0 0
        %845 = vmatpush1.bf16.msra.mxu0 0
        %846 = vmatprep.subr.bf16.mxu0 0
        %847 = vmatpush1.bf16.msra.mxu0 0
        %848 = vmatprep.subr.bf16.mxu0 0
        %849 = vmatpush1.bf16.msra.mxu0 0
        %850 = vmatprep.subr.bf16.mxu0 0
        %851 = vmatpush1.bf16.msra.mxu0 0
        %852 = vmatprep.subr.bf16.mxu0 0
        %853 = vmatpush1.bf16.msra.mxu0 0
        %854 = vmatprep.subr.bf16.mxu0 0
        %855 = vmatpush1.bf16.msra.mxu0 0
        %856 = vmatprep.subr.bf16.mxu0 0
        %857 = vmatpush1.bf16.msra.mxu0 0
        %858 = vmatprep.subr.bf16.mxu0 0
        %859 = vmatpush1.bf16.msra.mxu0 0
        %860 = vmatprep.subr.bf16.mxu0 0
        %861 = vmatpush1.bf16.msra.mxu0 0
        %862 = vmatprep.subr.bf16.mxu0 0
        %863 = vmatpush1.bf16.msra.mxu0 0
        %864 = vmatprep.subr.bf16.mxu0 0
        %865 = vmatpush1.bf16.msra.mxu0 0
        %866 = vmatprep.mubr.bf16.mxu0 0
        %867 = vmatmul.mubr.bf16.gmra.mrb[0].mxu0 %v832
        %v868 = vpop.f32.mrb[0].mxu0
        %v869 = vadd.f32 0.0, %v868
        %v870 = vpop.f32.mrb[0].mxu0
        %v871 = vpop.f32.mrb[0].mxu0
        %v872 = vadd.f32 0.0, %v871
        %v873 = vpop.f32.mrb[0].mxu0
        %874 = vdwg.mxu0
        %v875 = vmax.f32 %v869, 0.0
        %v876 = vmax.f32 %v872, 0.0
        %879 = vrot.lane.b32.xlu0 %v875, 8
        %v880 = vpop.permute.xlu0 %879
        %881 = vrot.lane.b32.xlu0 %v876, 8
        %v882 = vpop.permute.xlu0 %881
        %v885 = vsel %vm677, %v783, %v880
        %v886 = vsel %vm677, %v784, %v882
        %v887 = vpack.c.bf16 %v886, %v885
        %v889 = vcombine.high %v680, %v680
        %v891 = vunpack.c.l.s4 1983009808
        %v892 = vunpack.c.0.s8 %v891
        %v893 = vlaneseq
        %v894 = vshrl.u32 %v893, 7
        %v895 = vsub.s32 %v892, %v894
        %v896 = vrot.slane %v680, %v895
        %v898 = vunpack.c.l.s4 1983009808
        %v899 = vunpack.c.0.s8 %v898
        %v900 = vlaneseq
        %v901 = vshrl.u32 %v900, 7
        %v902 = vsub.s32 %v899, %v901
        %v903 = vrot.slane %v889, %v902
        %v904 = vcombine.high %v896, %v896
        %v905 = vcombine.high %v903, %v903
        %v911 = vcombine.high %v887, %v887
        %v913 = vunpack.c.l.s4 1983009808
        %v914 = vunpack.c.0.s8 %v913
        %v915 = vlaneseq
        %v916 = vshrl.u32 %v915, 7
        %v917 = vsub.s32 %v914, %v916
        %v918 = vrot.slane %v887, %v917
        %v920 = vunpack.c.l.s4 1983009808
        %v921 = vunpack.c.0.s8 %v920
        %v922 = vlaneseq
        %v923 = vshrl.u32 %v922, 7
        %v924 = vsub.s32 %v921, %v923
        %v925 = vrot.slane %v911, %v924
        %v926 = vcombine.high %v918, %v918
        %v927 = vcombine.high %v925, %v925
        %vm932 = vcmask 123904
        %933 = vst.msk [vmem:[%s176] sm:$0x3] %vm932, %v896
        %934 = vst.msk [vmem:[%s176 + $0x2] sm:$0x3] %vm932, %v918
        %935 = vst.msk [vmem:[%s176 + $0x4] sm:$0x3] %vm932, %v904
        %936 = vst.msk [vmem:[%s176 + $0x6] sm:$0x3] %vm932, %v926
        %937 = vst.msk [vmem:[%s176 + $0x8] sm:$0x3] %vm932, %v903
        %938 = vst.msk [vmem:[%s176 + $0xa] sm:$0x3] %vm932, %v925
        %939 = vst.msk [vmem:[%s176 + $0xc] sm:$0x3] %vm932, %v905
        %940 = vst.msk [vmem:[%s176 + $0xe] sm:$0x3] %vm932, %v927
        %s941 = sand.u32 %s75, 1
        %s942 = scalar_lea.sflag [#allocation4], %s941
        %s943 = sand.u32 %s75, 1
        %s944 = smul.addr %s943, 16
        %s945 = scalar_lea.vmem [#allocation7], %s944
        // Predicated region
        $region37: #{dcgan_g_nobn_forward.4} parent=27 // pred_check
          %p946 = pneg %p85
        $region38: #{dcgan_g_nobn_forward.4} parent=27 // pred_check_branch
          %948 = sbr.rel (%p946) target = $region40
        $region39: #{dcgan_g_nobn_forward.4} parent=27 // pred_region
          %s950 = ssub.s32 256, 256
          %951 = vsyncadd %s942, %s950
          %s952 = smul.addr %s20, 8
          %s953 = smul.addr %s952, 32
          %s954 = scalar_lea.hbm %s2, %s953
          %s955 = sshll.u32 %s945, 4
          %s956 = int_to_ptr.vmem [resolvable:$true] %s955
          %961 = dma.vmem_to_hbm [thread:$0]  %s956, 256, %s954, %s942, 32, 32, 2
        $region40: #{dcgan_g_nobn_forward.4} parent=27 // pred_fallthru
          _
      $region28: #{dcgan_g_nobn_forward.4} parent=5 // pred_fallthru
        _
      %p962 = scmp.le.s32.totalorder 2, %s15
      // Predicated region
      $region41: #{dcgan_g_nobn_forward.4} parent=5 // pred_check
        %p963 = pneg %p962
      $region42: #{dcgan_g_nobn_forward.4} parent=5 // pred_check_branch
        %965 = sbr.rel (%p963) target = $region44
      $region43: #{dcgan_g_nobn_forward.4} parent=5 // pred_region
        %s966 = ssub.s32 %s15, 2
        // Predicated region
        $region45: #{dcgan_g_nobn_forward.4} parent=43 // pred_check
          %p967 = pneg %p91
        $region46: #{dcgan_g_nobn_forward.4} parent=43 // pred_check_branch
          %969 = sbr.rel (%p967) target = $region48
        $region47: #{dcgan_g_nobn_forward.4} parent=43 // pred_region
          %s970 = sand.u32 %s76, 1
          %s971 = scalar_lea.sflag [#allocation4], %s970
          %s972 = sand.u32 %s76, 1
          %s973 = smul.addr %s972, 16
          %s974 = scalar_lea.vmem [#allocation7], %s973
          %975 = dma.done %s971, 256
        $region48: #{dcgan_g_nobn_forward.4} parent=43 // pred_fallthru
          _
      $region44: #{dcgan_g_nobn_forward.4} parent=5 // pred_fallthru
        _
    $region6: #{dcgan_g_nobn_forward.4} parent=1 // loop_footer
      %s19 = sadd.s32 1, %s15
    $region7: #{dcgan_g_nobn_forward.4} parent=1 // loop_footer_branch
      %14 = sbr.rel target = $region3
    $region8: #{dcgan_g_nobn_forward.4} parent=1 // loop_exit
      _
    %976 = vsyncpa [#allocation3], 1
    %s977 = scalar_lea.sflag [#allocation3], 1
    %978 = vsyncpa %s977, 1
    %979 = vsyncpa [#allocation6], 1
    %980 = vsyncpa [#allocation4], 1
    %s981 = scalar_lea.sflag [#allocation4], 1
    %982 = vsyncpa %s981, 1

// kernel: dcgan_g_nobn_forward.5
$region0: #{dcgan_g_nobn_forward.5}
  #allocation0 [shape = 'u32[]', space=smem, size = 0x4, offset = 0x4, fixed_abs, tag = 'smem constant byte address 0x4 - core index']
  #allocation1 [shape = 'u32[144,128]{1,0:T(1,128)}', space=vmem, size = 0x12000, scoped, tag = 'internal scratch']
  %s0 = inlined_call_operand.hbm [shape: bf16[2,8,8,8], index: 0, kind: input, shape index: {}]
  %s1 = inlined_call_operand.hbm [shape: bf16[2,2,32,3], index: 1, kind: input, shape index: {}]
  %s2 = inlined_call_operand.hbm [shape: f32[2,8,2,8,6], index: 2, kind: output, shape index: {}]
  %s3 = sld [smem:[#allocation0]]
  $region49: #{dcgan_g_nobn_forward.5} parent=0
    _
  %s5 = ssub.s32 1, %s3
  %s6 = scalar_select 0, %s5, %s3
  $region1: #{dcgan_g_nobn_forward.5} parent=0
    #allocation2 [shape = 'u8[32768]{0}', space=vmem, size = 0x8000, scoped, tag = 'input window, operand 0']
    #allocation3 [shape = 's32[2]{0}', space=sflag, size = 0x8, scoped, tag = 'scoped memory for dcgan_g_nobn_forward.5']
    #allocation4 [shape = 's32[2]{0}', space=sflag, size = 0x8, scoped, tag = 'scoped memory for dcgan_g_nobn_forward.5']
    #allocation5 [shape = 'u8[32768]{0}', space=vmem, size = 0x8000, scoped, tag = 'input window, operand 1, single buffered']
    #allocation6 [shape = 's32[1]{0}', space=sflag, size = 0x4, scoped, tag = 'scoped memory for dcgan_g_nobn_forward.5']
    #allocation7 [shape = 'u8[131072]{0}', space=vmem, size = 0x20000, scoped, tag = 'output window, operand 0']
    %7 = vsyncpa [#allocation3], 0
    %s8 = scalar_lea.sflag [#allocation3], 1
    %9 = vsyncpa %s8, 0
    %10 = vsyncpa [#allocation6], 0
    %11 = vsyncpa [#allocation4], 0
    %s12 = scalar_lea.sflag [#allocation4], 1
    %13 = vsyncpa %s12, 0
    loop: start=0, step=1, limit=4
    $region2: #{dcgan_g_nobn_forward.5} parent=1 // loop_pre_header
      _
    $region3: #{dcgan_g_nobn_forward.5} parent=1 // loop_header
      %s15 = sphi 0, %s19
      %p16 = scmp.ge.s32.totalorder %s15, 4
      %s25 = sphi 0, %s27
      %s28 = sphi 0, %s25
      %s29 = sphi 0, %s28
      %s45 = sphi 0, %s29
      %s49 = sphi 0, %s49
      %s51 = sphi 0, %s49
      %s52 = sphi 0, %s51
      %s66 = sphi 0, %s52
      %s72 = sphi 0, %s74
      %s75 = sphi 0, %s72
      %s76 = sphi 0, %s75
      %s92 = sphi 0, %s76
    $region4: #{dcgan_g_nobn_forward.5} parent=1 // loop_header_branch
      %18 = sbr.rel (%p16) target = $region8
    $region5: #{dcgan_g_nobn_forward.5} parent=1 // loop_body
      %s20 = ssub.s32 %s15, 1
      %s21 = ssub.s32 %s15, 2
      %s22 = sadd.s32 %s15, 1
      %s23 = ssub.s32 %s15, %s22
      %p24 = scmp.eq.s32.totalorder %s23, 0
      %s26 = sadd.s32 %s25, 1
      %s27 = scalar_select %p24, %s25, %s26
      %p30 = pneg %p24
      %p31 = scmp.eq.s32.totalorder %s15, 1
      %p32 = por %p30, %p31
      %p33 = scmp.ne.s32.totalorder %s25, %s28
      %p34 = scmp.eq.s32.totalorder %s15, 0
      %p35 = por %p33, %p34
      %p36 = scmp.ne.s32.totalorder %s25, %s28
      %p37 = scmp.eq.s32.totalorder %s20, 1
      %p38 = por %p36, %p37
      %p39 = scmp.ne.s32.totalorder %s28, %s29
      %p40 = scmp.eq.s32.totalorder %s20, 0
      %p41 = por %p39, %p40
      %p42 = scmp.ne.s32.totalorder %s28, %s29
      %p43 = scmp.eq.s32.totalorder %s21, 1
      %p44 = por %p42, %p43
      %p46 = scmp.ne.s32.totalorder %s29, %s45
      %p47 = scmp.eq.s32.totalorder %s21, 0
      %p48 = por %p46, %p47
      %s50 = sadd.s32 %s49, 1
      %p53 = scmp.eq.s32.totalorder %s15, 1
      %p54 = scmp.ne.s32.totalorder %s49, %s51
      %p55 = scmp.eq.s32.totalorder %s15, 0
      %p56 = por %p54, %p55
      %p57 = scmp.ne.s32.totalorder %s49, %s51
      %p58 = scmp.eq.s32.totalorder %s20, 1
      %p59 = por %p57, %p58
      %p60 = scmp.ne.s32.totalorder %s51, %s52
      %p61 = scmp.eq.s32.totalorder %s20, 0
      %p62 = por %p60, %p61
      %p63 = scmp.ne.s32.totalorder %s51, %s52
      %p64 = scmp.eq.s32.totalorder %s21, 1
      %p65 = por %p63, %p64
      %p67 = scmp.ne.s32.totalorder %s52, %s66
      %p68 = scmp.eq.s32.totalorder %s21, 0
      %p69 = por %p67, %p68
      %s70 = ssub.s32 %s15, %s22
      %p71 = scmp.eq.s32.totalorder %s70, 0
      %s73 = sadd.s32 %s72, 1
      %s74 = scalar_select %p71, %s72, %s73
      %p77 = pneg %p71
      %p78 = scmp.eq.s32.totalorder %s15, 1
      %p79 = por %p77, %p78
      %p80 = scmp.ne.s32.totalorder %s72, %s75
      %p81 = scmp.eq.s32.totalorder %s15, 0
      %p82 = por %p80, %p81
      %p83 = scmp.ne.s32.totalorder %s72, %s75
      %p84 = scmp.eq.s32.totalorder %s20, 1
      %p85 = por %p83, %p84
      %p86 = scmp.ne.s32.totalorder %s75, %s76
      %p87 = scmp.eq.s32.totalorder %s20, 0
      %p88 = por %p86, %p87
      %p89 = scmp.ne.s32.totalorder %s75, %s76
      %p90 = scmp.eq.s32.totalorder %s21, 1
      %p91 = por %p89, %p90
      %p93 = scmp.ne.s32.totalorder %s76, %s92
      %p94 = scmp.eq.s32.totalorder %s21, 0
      %p95 = por %p93, %p94
      %p96 = scmp.le.s32.totalorder 1, %s15
      %p97 = scmp.lt.s32.totalorder %s15, 3
      %p98 = pnand %p96, %p97
      %p99 = pneg %p98
      // Predicated region
      $region9: #{dcgan_g_nobn_forward.5} parent=5 // pred_check
        _
      $region10: #{dcgan_g_nobn_forward.5} parent=5 // pred_check_branch
        %101 = sbr.rel (%p98) target = $region12
      $region11: #{dcgan_g_nobn_forward.5} parent=5 // pred_region
        %s102 = ssub.s32 %s15, 1
        // Predicated region
        $region13: #{dcgan_g_nobn_forward.5} parent=11 // pred_check
          %p103 = pneg %p62
        $region14: #{dcgan_g_nobn_forward.5} parent=11 // pred_check_branch
          %105 = sbr.rel (%p103) target = $region16
        $region15: #{dcgan_g_nobn_forward.5} parent=11 // pred_region
          %s107 = ssub.s32 1024, 1024
          %108 = vsyncadd [#allocation6], %s107
          %s109 = sshll.u32 [#allocation5], 4
          %s110 = int_to_ptr.vmem [resolvable:$true] %s109
          %115 = dma.hbm_to_vmem [thread:$0]  %s1, 1024, %s110, [#allocation6], 64, 64, 4
        $region16: #{dcgan_g_nobn_forward.5} parent=11 // pred_fallthru
          _
      $region12: #{dcgan_g_nobn_forward.5} parent=5 // pred_fallthru
        _
      %p116 = scmp.lt.s32.totalorder %s15, 2
      // Predicated region
      $region17: #{dcgan_g_nobn_forward.5} parent=5 // pred_check
        %p117 = pneg %p116
      $region18: #{dcgan_g_nobn_forward.5} parent=5 // pred_check_branch
        %119 = sbr.rel (%p117) target = $region20
      $region19: #{dcgan_g_nobn_forward.5} parent=5 // pred_region
        // Predicated region
        $region21: #{dcgan_g_nobn_forward.5} parent=19 // pred_check
          %p120 = pneg %p35
        $region22: #{dcgan_g_nobn_forward.5} parent=19 // pred_check_branch
          %122 = sbr.rel (%p120) target = $region24
        $region23: #{dcgan_g_nobn_forward.5} parent=19 // pred_region
          %s123 = sand.u32 %s25, 1
          %s124 = scalar_lea.sflag [#allocation3], %s123
          %s125 = sand.u32 %s25, 1
          %s126 = smul.addr %s125, 32
          %s127 = scalar_lea.vmem [#allocation2], %s126
          %s129 = ssub.s32 512, 512
          %130 = vsyncadd %s124, %s129
          %s131 = smul.addr %s15, 8
          %s132 = smul.addr %s131, 64
          %s133 = scalar_lea.hbm %s0, %s132
          %s134 = sshll.u32 %s127, 4
          %s135 = int_to_ptr.vmem [resolvable:$true] %s134
          %140 = dma.hbm_to_vmem [thread:$0]  %s133, 512, %s135, %s124, 64, 64, 4
        $region24: #{dcgan_g_nobn_forward.5} parent=19 // pred_fallthru
          _
      $region20: #{dcgan_g_nobn_forward.5} parent=5 // pred_fallthru
        _
      %p141 = scmp.le.s32.totalorder 1, %s15
      %p142 = scmp.lt.s32.totalorder %s15, 3
      %p143 = pnand %p141, %p142
      %p144 = pneg %p143
      // Predicated region
      $region25: #{dcgan_g_nobn_forward.5} parent=5 // pred_check
        _
      $region26: #{dcgan_g_nobn_forward.5} parent=5 // pred_check_branch
        %146 = sbr.rel (%p143) target = $region28
      $region27: #{dcgan_g_nobn_forward.5} parent=5 // pred_region
        %s147 = ssub.s32 %s15, 1
        %s148 = sand.u32 %s28, 1
        %s149 = scalar_lea.sflag [#allocation3], %s148
        %s150 = sand.u32 %s28, 1
        %s151 = smul.addr %s150, 32
        %s152 = scalar_lea.vmem [#allocation2], %s151
        // Predicated region
        $region29: #{dcgan_g_nobn_forward.5} parent=27 // pred_check
          %p153 = pneg %p41
        $region30: #{dcgan_g_nobn_forward.5} parent=27 // pred_check_branch
          %155 = sbr.rel (%p153) target = $region32
        $region31: #{dcgan_g_nobn_forward.5} parent=27 // pred_region
          %156 = dma.done %s149, 512
        $region32: #{dcgan_g_nobn_forward.5} parent=27 // pred_fallthru
          _
        // Predicated region
        $region33: #{dcgan_g_nobn_forward.5} parent=27 // pred_check
          %p157 = pneg %p62
        $region34: #{dcgan_g_nobn_forward.5} parent=27 // pred_check_branch
          %159 = sbr.rel (%p157) target = $region36
        $region35: #{dcgan_g_nobn_forward.5} parent=27 // pred_region
          %160 = dma.done [#allocation6], 1024
        $region36: #{dcgan_g_nobn_forward.5} parent=27 // pred_fallthru
          _
        %s161 = sand.u32 %s28, 1
        %s162 = scalar_lea.sflag [#allocation3], %s161
        %s163 = sand.u32 %s28, 1
        %s164 = smul.addr %s163, 32
        %s165 = scalar_lea.vmem [#allocation2], %s164
        %p166 = pneg %p41
        %p167 = pneg %p38
        %p168 = pneg %p62
        %p169 = pneg %p59
        %p170 = pneg %p88
        %p171 = pneg %p85
        %s172 = sand.u32 %s75, 1
        %s173 = scalar_lea.sflag [#allocation4], %s172
        %s174 = sand.u32 %s75, 1
        %s175 = smul.addr %s174, 128
        %s176 = scalar_lea.vmem [#allocation7], %s175
        %v178 = vld [vmem:[%s152] sm:$0xf]
        %v179 = vld [vmem:[%s152 + $0x4] sm:$0xf]
        %v180 = vld [vmem:[%s152 + $0x8] sm:$0xf]
        %v181 = vld [vmem:[%s152 + $0xc] sm:$0xf]
        %v182 = vld [vmem:[%s152 + $0x10] sm:$0xf]
        %v183 = vld [vmem:[%s152 + $0x14] sm:$0xf]
        %v184 = vld [vmem:[%s152 + $0x18] sm:$0xf]
        %v185 = vld [vmem:[%s152 + $0x1c] sm:$0xf]
        %v187 = vshrl.u32 0, 16
        %v189 = vrot.slane %v187, 7
        %v190 = vshll.u32 0, 16
        %v192 = vor.u32 %v189, %v190
        %v194 = vshrl.u32 %v178, 16
        %v196 = vrot.slane %v194, 7
        %v197 = vshll.u32 %v178, 16
        %v199 = vor.u32 %v196, %v197
        %v201 = vshrl.u32 %v179, 16
        %v203 = vrot.slane %v201, 7
        %v204 = vshll.u32 %v179, 16
        %v206 = vor.u32 %v203, %v204
        %v208 = vshrl.u32 %v180, 16
        %v210 = vrot.slane %v208, 7
        %v211 = vshll.u32 %v180, 16
        %v213 = vor.u32 %v210, %v211
        %v215 = vshrl.u32 %v181, 16
        %v217 = vrot.slane %v215, 7
        %v218 = vshll.u32 %v181, 16
        %v220 = vor.u32 %v217, %v218
        %v222 = vshrl.u32 %v182, 16
        %v224 = vrot.slane %v222, 7
        %v225 = vshll.u32 %v182, 16
        %v227 = vor.u32 %v224, %v225
        %v229 = vshrl.u32 %v183, 16
        %v231 = vrot.slane %v229, 7
        %v232 = vshll.u32 %v183, 16
        %v234 = vor.u32 %v231, %v232
        %v236 = vshrl.u32 %v184, 16
        %v238 = vrot.slane %v236, 7
        %v239 = vshll.u32 %v184, 16
        %v241 = vor.u32 %v238, %v239
        %v243 = vshrl.u32 %v185, 16
        %v245 = vrot.slane %v243, 7
        %v246 = vshll.u32 %v185, 16
        %v248 = vor.u32 %v245, %v246
        %vm258 = vcmask 1040384
        %vm259 = vsmask.f32 256
        %vm260 = vmand %vm258, %vm259
        %v261 = vsel %vm260, 0, %v192
        %v262 = vsel %vm260, 0, %v199
        %v263 = vsel %vm260, 0, %v206
        %v264 = vsel %vm260, 0, %v213
        %v265 = vsel %vm260, 0, %v220
        %v266 = vsel %vm260, 0, %v227
        %v267 = vsel %vm260, 0, %v234
        %v268 = vsel %vm260, 0, %v241
        %v269 = vsel %vm260, 0, %v248
        %vm270 = vcmask 1044480
        %vm271 = vsmask.f32 4352
        %vm272 = vmand %vm270, %vm271
        %v273 = vsel %vm272, %v261, 0
        %v274 = vsel %vm272, %v262, 0
        %v275 = vsel %vm272, %v263, 0
        %v276 = vsel %vm272, %v264, 0
        %v277 = vsel %vm272, %v265, 0
        %v278 = vsel %vm272, %v266, 0
        %v279 = vsel %vm272, %v267, 0
        %v280 = vsel %vm272, %v268, 0
        %v281 = vsel %vm272, %v269, 0
        %v291 = vunpack.c.l.b16 %v273
        %v292 = vunpack.c.h.b16 %v273
        %v293 = vunpack.c.l.b16 %v274
        %v294 = vunpack.c.h.b16 %v274
        %v295 = vunpack.c.l.b16 %v275
        %v296 = vunpack.c.h.b16 %v275
        %v297 = vunpack.c.l.b16 %v276
        %v298 = vunpack.c.h.b16 %v276
        %v299 = vunpack.c.l.b16 %v277
        %v300 = vunpack.c.h.b16 %v277
        %v301 = vunpack.c.l.b16 %v278
        %v302 = vunpack.c.h.b16 %v278
        %v303 = vunpack.c.l.b16 %v279
        %v304 = vunpack.c.h.b16 %v279
        %v305 = vunpack.c.l.b16 %v280
        %v306 = vunpack.c.h.b16 %v280
        %v307 = vunpack.c.l.b16 %v281
        %v308 = vunpack.c.h.b16 %v281
        %v309 = vpack.c.b16 %v291, %v291
        %v310 = vpack.c.b16 %v292, %v292
        %v311 = vpack.c.b16 %v293, %v293
        %v312 = vpack.c.b16 %v294, %v294
        %v313 = vpack.c.b16 %v295, %v295
        %v314 = vpack.c.b16 %v296, %v296
        %v315 = vpack.c.b16 %v297, %v297
        %v316 = vpack.c.b16 %v298, %v298
        %v317 = vpack.c.b16 %v299, %v299
        %v318 = vpack.c.b16 %v300, %v300
        %v319 = vpack.c.b16 %v301, %v301
        %v320 = vpack.c.b16 %v302, %v302
        %v321 = vpack.c.b16 %v303, %v303
        %v322 = vpack.c.b16 %v304, %v304
        %v323 = vpack.c.b16 %v305, %v305
        %v324 = vpack.c.b16 %v306, %v306
        %v325 = vpack.c.b16 %v307, %v307
        %v326 = vpack.c.b16 %v308, %v308
        %vm327 = vsmask.f32 3328
        %vm328 = vsmask.f32 7440
        %vm329 = vmor %vm327, %vm328
        %v331 = vshrl.u32 %v309, 16
        %v333 = vrot.slane %v331, 4
        %v334 = vshll.u32 %v309, 16
        %v336 = vrot.slane %v334, 5
        %v337 = vor.u32 %v333, %v336
        %v338 = vrot.slane %v337, 4
        %v340 = vshll.u32 %v310, 16
        %v342 = vrot.slane %v340, 5
        %v343 = vsel %vm329, %v338, %v342
        %v345 = vshrl.u32 %v311, 16
        %v347 = vrot.slane %v345, 4
        %v348 = vshll.u32 %v311, 16
        %v350 = vrot.slane %v348, 5
        %v351 = vor.u32 %v347, %v350
        %v352 = vrot.slane %v351, 4
        %v354 = vshll.u32 %v312, 16
        %v356 = vrot.slane %v354, 5
        %v357 = vsel %vm329, %v352, %v356
        %v359 = vshrl.u32 %v313, 16
        %v361 = vrot.slane %v359, 4
        %v362 = vshll.u32 %v313, 16
        %v364 = vrot.slane %v362, 5
        %v365 = vor.u32 %v361, %v364
        %v366 = vrot.slane %v365, 4
        %v368 = vshll.u32 %v314, 16
        %v370 = vrot.slane %v368, 5
        %v371 = vsel %vm329, %v366, %v370
        %v373 = vshrl.u32 %v315, 16
        %v375 = vrot.slane %v373, 4
        %v376 = vshll.u32 %v315, 16
        %v378 = vrot.slane %v376, 5
        %v379 = vor.u32 %v375, %v378
        %v380 = vrot.slane %v379, 4
        %v382 = vshll.u32 %v316, 16
        %v384 = vrot.slane %v382, 5
        %v385 = vsel %vm329, %v380, %v384
        %v387 = vshrl.u32 %v317, 16
        %v389 = vrot.slane %v387, 4
        %v390 = vshll.u32 %v317, 16
        %v392 = vrot.slane %v390, 5
        %v393 = vor.u32 %v389, %v392
        %v394 = vrot.slane %v393, 4
        %v396 = vshll.u32 %v318, 16
        %v398 = vrot.slane %v396, 5
        %v399 = vsel %vm329, %v394, %v398
        %v401 = vshrl.u32 %v319, 16
        %v403 = vrot.slane %v401, 4
        %v404 = vshll.u32 %v319, 16
        %v406 = vrot.slane %v404, 5
        %v407 = vor.u32 %v403, %v406
        %v408 = vrot.slane %v407, 4
        %v410 = vshll.u32 %v320, 16
        %v412 = vrot.slane %v410, 5
        %v413 = vsel %vm329, %v408, %v412
        %v415 = vshrl.u32 %v321, 16
        %v417 = vrot.slane %v415, 4
        %v418 = vshll.u32 %v321, 16
        %v420 = vrot.slane %v418, 5
        %v421 = vor.u32 %v417, %v420
        %v422 = vrot.slane %v421, 4
        %v424 = vshll.u32 %v322, 16
        %v426 = vrot.slane %v424, 5
        %v427 = vsel %vm329, %v422, %v426
        %v429 = vshrl.u32 %v323, 16
        %v431 = vrot.slane %v429, 4
        %v432 = vshll.u32 %v323, 16
        %v434 = vrot.slane %v432, 5
        %v435 = vor.u32 %v431, %v434
        %v436 = vrot.slane %v435, 4
        %v438 = vshll.u32 %v324, 16
        %v440 = vrot.slane %v438, 5
        %v441 = vsel %vm329, %v436, %v440
        %v443 = vshrl.u32 %v325, 16
        %v445 = vrot.slane %v443, 4
        %v446 = vshll.u32 %v325, 16
        %v448 = vrot.slane %v446, 5
        %v449 = vor.u32 %v445, %v448
        %v450 = vrot.slane %v449, 4
        %v452 = vshll.u32 %v326, 16
        %v454 = vrot.slane %v452, 5
        %v455 = vsel %vm329, %v450, %v454
        %vm456 = vcmask 1042432
        %vm457 = vcmask 1046532
        %vm458 = vmor %vm456, %vm457
        %v459 = vrot.slane %v309, 5
        %v460 = vrot.slane %v459, 4
        %v461 = vrot.slane %v310, 5
        %v462 = vsel %vm458, %v460, %v461
        %v463 = vrot.slane %v311, 5
        %v464 = vrot.slane %v463, 4
        %v465 = vrot.slane %v312, 5
        %v466 = vsel %vm458, %v464, %v465
        %v467 = vrot.slane %v313, 5
        %v468 = vrot.slane %v467, 4
        %v469 = vrot.slane %v314, 5
        %v470 = vsel %vm458, %v468, %v469
        %v471 = vrot.slane %v315, 5
        %v472 = vrot.slane %v471, 4
        %v473 = vrot.slane %v316, 5
        %v474 = vsel %vm458, %v472, %v473
        %v475 = vrot.slane %v317, 5
        %v476 = vrot.slane %v475, 4
        %v477 = vrot.slane %v318, 5
        %v478 = vsel %vm458, %v476, %v477
        %v479 = vrot.slane %v319, 5
        %v480 = vrot.slane %v479, 4
        %v481 = vrot.slane %v320, 5
        %v482 = vsel %vm458, %v480, %v481
        %v483 = vrot.slane %v321, 5
        %v484 = vrot.slane %v483, 4
        %v485 = vrot.slane %v322, 5
        %v486 = vsel %vm458, %v484, %v485
        %v487 = vrot.slane %v323, 5
        %v488 = vrot.slane %v487, 4
        %v489 = vrot.slane %v324, 5
        %v490 = vsel %vm458, %v488, %v489
        %v491 = vrot.slane %v325, 5
        %v492 = vrot.slane %v491, 4
        %v493 = vrot.slane %v326, 5
        %v494 = vsel %vm458, %v492, %v493
        %v495 = vunpack.c.l.b16 %v357
        %v496 = vunpack.c.l.b16 %v371
        %v497 = vunpack.c.l.b16 %v385
        %v498 = vunpack.c.l.b16 %v399
        %v499 = vunpack.c.l.b16 %v413
        %v500 = vunpack.c.l.b16 %v427
        %v501 = vunpack.c.l.b16 %v441
        %v502 = vunpack.c.l.b16 %v455
        %v503 = vpack.c.b16 %v496, %v495
        %v504 = vpack.c.b16 %v498, %v497
        %v505 = vpack.c.b16 %v500, %v499
        %v506 = vpack.c.b16 %v502, %v501
        %v507 = vpack.c.b16 %v295, %v293
        %v508 = vpack.c.b16 %v299, %v297
        %v509 = vpack.c.b16 %v303, %v301
        %v510 = vpack.c.b16 %v307, %v305
        %511 = vrot.lane.b32.xlu0 %v507, 8
        %v512 = vpop.permute.xlu0 %511
        %513 = vrot.lane.b32.xlu0 %v508, 8
        %v514 = vpop.permute.xlu0 %513
        %515 = vrot.lane.b32.xlu0 %v509, 8
        %v516 = vpop.permute.xlu0 %515
        %517 = vrot.lane.b32.xlu0 %v510, 8
        %v518 = vpop.permute.xlu0 %517
        %v519 = vunpack.c.l.b16 %v343
        %v520 = vpack.c.b16 %v495, %v519
        %v521 = vpack.c.b16 %v497, %v496
        %v522 = vpack.c.b16 %v499, %v498
        %v523 = vpack.c.b16 %v501, %v500
        %524 = vrot.lane.b32.xlu0 %v520, 16
        %v525 = vpop.permute.xlu0 %524
        %526 = vrot.lane.b32.xlu0 %v521, 16
        %v527 = vpop.permute.xlu0 %526
        %528 = vrot.lane.b32.xlu0 %v522, 16
        %v529 = vpop.permute.xlu0 %528
        %530 = vrot.lane.b32.xlu0 %v523, 16
        %v531 = vpop.permute.xlu0 %530
        %v532 = vpack.c.b16 %v293, %v291
        %v533 = vpack.c.b16 %v297, %v295
        %v534 = vpack.c.b16 %v301, %v299
        %v535 = vpack.c.b16 %v305, %v303
        %536 = vrot.lane.b32.xlu0 %v532, 24
        %v537 = vpop.permute.xlu0 %536
        %538 = vrot.lane.b32.xlu0 %v533, 24
        %v539 = vpop.permute.xlu0 %538
        %540 = vrot.lane.b32.xlu0 %v534, 24
        %v541 = vpop.permute.xlu0 %540
        %542 = vrot.lane.b32.xlu0 %v535, 24
        %v543 = vpop.permute.xlu0 %542
        %vm544 = vcmask 64512
        %v547 = vsel %vm544, %v503, %v512
        %v550 = vsel %vm544, %v504, %v514
        %v553 = vsel %vm544, %v505, %v516
        %v556 = vsel %vm544, %v506, %v518
        %vm557 = vcmask 130048
        %v559 = vsel %vm557, %v547, %v525
        %v561 = vsel %vm557, %v550, %v527
        %v563 = vsel %vm557, %v553, %v529
        %v565 = vsel %vm557, %v556, %v531
        %vm566 = vcmask 195584
        %v568 = vsel %vm566, %v559, %v537
        %v570 = vsel %vm566, %v561, %v539
        %v572 = vsel %vm566, %v563, %v541
        %v574 = vsel %vm566, %v565, %v543
        %v575 = vld [vmem:[#allocation5] sm:$0xf]
        %v576 = vld [vmem:[#allocation5 + $0x4] sm:$0xf]
        %v577 = vld [vmem:[#allocation5 + $0x8] sm:$0xf]
        %v578 = vld [vmem:[#allocation5 + $0xc] sm:$0xf]
        %v583 = vunpack.c.l.b16 %v575
        %v584 = vunpack.c.l.b16 %v576
        %v585 = vunpack.c.l.b16 %v577
        %v586 = vunpack.c.l.b16 %v578
        %v587 = vpack.c.b16 %v584, %v583
        %v588 = vpack.c.b16 %v586, %v585
        %vm591 = vcmask 261120
        %v592 = vsel %vm591, %v568, 0
        %v594 = vsel %vm591, %v570, 0
        %v596 = vsel %vm591, %v572, 0
        %v598 = vsel %vm591, %v574, 0
        %600 = vmatprep.subr.bf16.mxu0 0
        %601 = vmatpush1.bf16.msra.mxu0 %v587
        %602 = vmatprep.subr.bf16.mxu0 0
        %603 = vmatpush1.bf16.msra.mxu0 %v588
        %604 = vmatprep.subr.bf16.mxu0 0
        %605 = vmatpush1.bf16.msra.mxu0 0
        %606 = vmatprep.subr.bf16.mxu0 0
        %607 = vmatpush1.bf16.msra.mxu0 0
        %608 = vmatprep.subr.bf16.mxu0 0
        %609 = vmatpush1.bf16.msra.mxu0 0
        %610 = vmatprep.subr.bf16.mxu0 0
        %611 = vmatpush1.bf16.msra.mxu0 0
        %612 = vmatprep.subr.bf16.mxu0 0
        %613 = vmatpush1.bf16.msra.mxu0 0
        %614 = vmatprep.subr.bf16.mxu0 0
        %615 = vmatpush1.bf16.msra.mxu0 0
        %616 = vmatprep.subr.bf16.mxu0 0
        %617 = vmatpush1.bf16.msra.mxu0 0
        %618 = vmatprep.subr.bf16.mxu0 0
        %619 = vmatpush1.bf16.msra.mxu0 0
        %620 = vmatprep.subr.bf16.mxu0 0
        %621 = vmatpush1.bf16.msra.mxu0 0
        %622 = vmatprep.subr.bf16.mxu0 0
        %623 = vmatpush1.bf16.msra.mxu0 0
        %624 = vmatprep.subr.bf16.mxu0 0
        %625 = vmatpush1.bf16.msra.mxu0 0
        %626 = vmatprep.subr.bf16.mxu0 0
        %627 = vmatpush1.bf16.msra.mxu0 0
        %628 = vmatprep.subr.bf16.mxu0 0
        %629 = vmatpush1.bf16.msra.mxu0 0
        %630 = vmatprep.subr.bf16.mxu0 0
        %631 = vmatpush1.bf16.msra.mxu0 0
        %632 = vmatprep.mubr.bf16.mxu0 0
        %633 = vmatmul.mubr.bf16.gmra.mrb[0].mxu0 %v592
        %v634 = vpop.f32.mrb[0].mxu0
        %v635 = vadd.f32 0.0, %v634
        %v636 = vpop.f32.mrb[0].mxu0
        %v637 = vpop.f32.mrb[0].mxu0
        %v638 = vadd.f32 0.0, %v637
        %v639 = vpop.f32.mrb[0].mxu0
        %640 = vmatprep.mubr.bf16.mxu0 0
        %641 = vmatmul.mubr.bf16.gmra.mrb[0].mxu0 %v594
        %v642 = vpop.f32.mrb[0].mxu0
        %v643 = vadd.f32 0.0, %v642
        %v644 = vpop.f32.mrb[0].mxu0
        %v645 = vpop.f32.mrb[0].mxu0
        %v646 = vadd.f32 0.0, %v645
        %v647 = vpop.f32.mrb[0].mxu0
        %648 = vmatprep.mubr.bf16.mxu0 0
        %649 = vmatmul.mubr.bf16.gmra.mrb[0].mxu0 %v596
        %v650 = vpop.f32.mrb[0].mxu0
        %v651 = vadd.f32 0.0, %v650
        %v652 = vpop.f32.mrb[0].mxu0
        %v653 = vpop.f32.mrb[0].mxu0
        %v654 = vadd.f32 0.0, %v653
        %v655 = vpop.f32.mrb[0].mxu0
        %656 = vmatprep.mubr.bf16.mxu0 0
        %657 = vmatmul.mubr.bf16.gmra.mrb[0].mxu0 %v598
        %v658 = vpop.f32.mrb[0].mxu0
        %v659 = vadd.f32 0.0, %v658
        %v660 = vpop.f32.mrb[0].mxu0
        %v661 = vpop.f32.mrb[0].mxu0
        %v662 = vadd.f32 0.0, %v661
        %v663 = vpop.f32.mrb[0].mxu0
        %664 = vdwg.mxu0
        %v665 = vxor.u32 %v635, 2147483648
        %v666 = vxor.u32 %v638, 2147483648
        %v667 = vxor.u32 %v643, 2147483648
        %v668 = vxor.u32 %v646, 2147483648
        %v669 = vxor.u32 %v651, 2147483648
        %v670 = vxor.u32 %v654, 2147483648
        %v671 = vxor.u32 %v659, 2147483648
        %v672 = vxor.u32 %v662, 2147483648
        %v673 = vmul.f32 %v665, 1.442695
        %v674 = vpow.pop %v673
        %v675 = vmul.f32 %v666, 1.442695
        %v676 = vpow.pop %v675
        %v677 = vmul.f32 %v667, 1.442695
        %v678 = vpow.pop %v677
        %v679 = vmul.f32 %v668, 1.442695
        %v680 = vpow.pop %v679
        %v681 = vmul.f32 %v669, 1.442695
        %v682 = vpow.pop %v681
        %v683 = vmul.f32 %v670, 1.442695
        %v684 = vpow.pop %v683
        %v685 = vmul.f32 %v671, 1.442695
        %v686 = vpow.pop %v685
        %v687 = vmul.f32 %v672, 1.442695
        %v688 = vpow.pop %v687
        %v689 = vadd.f32 %v674, 1.0
        %v690 = vadd.f32 %v676, 1.0
        %v691 = vadd.f32 %v678, 1.0
        %v692 = vadd.f32 %v680, 1.0
        %v693 = vadd.f32 %v682, 1.0
        %v694 = vadd.f32 %v684, 1.0
        %v695 = vadd.f32 %v686, 1.0
        %v696 = vadd.f32 %v688, 1.0
        %v697 = vrcp.pop %v689
        %v698 = vmul.f32 1.0, %v697
        %v699 = vrcp.pop %v690
        %v700 = vmul.f32 1.0, %v699
        %v701 = vrcp.pop %v691
        %v702 = vmul.f32 1.0, %v701
        %v703 = vrcp.pop %v692
        %v704 = vmul.f32 1.0, %v703
        %v705 = vrcp.pop %v693
        %v706 = vmul.f32 1.0, %v705
        %v707 = vrcp.pop %v694
        %v708 = vmul.f32 1.0, %v707
        %v709 = vrcp.pop %v695
        %v710 = vmul.f32 1.0, %v709
        %v711 = vrcp.pop %v696
        %v712 = vmul.f32 1.0, %v711
        %v713 = vunpack.c.l.b16 %v466
        %v714 = vunpack.c.l.b16 %v470
        %v715 = vunpack.c.l.b16 %v474
        %v716 = vunpack.c.l.b16 %v478
        %v717 = vunpack.c.l.b16 %v482
        %v718 = vunpack.c.l.b16 %v486
        %v719 = vunpack.c.l.b16 %v490
        %v720 = vunpack.c.l.b16 %v494
        %v721 = vpack.c.b16 %v714, %v713
        %v722 = vpack.c.b16 %v716, %v715
        %v723 = vpack.c.b16 %v718, %v717
        %v724 = vpack.c.b16 %v720, %v719
        %725 = vrot.lane.b32.xlu0 %v721, 8
        %v726 = vpop.permute.xlu0 %725
        %727 = vrot.lane.b32.xlu0 %v722, 8
        %v728 = vpop.permute.xlu0 %727
        %729 = vrot.lane.b32.xlu0 %v723, 8
        %v730 = vpop.permute.xlu0 %729
        %731 = vrot.lane.b32.xlu0 %v724, 8
        %v732 = vpop.permute.xlu0 %731
        %v733 = vunpack.c.l.b16 %v462
        %v734 = vpack.c.b16 %v713, %v733
        %v735 = vpack.c.b16 %v715, %v714
        %v736 = vpack.c.b16 %v717, %v716
        %v737 = vpack.c.b16 %v719, %v718
        %738 = vrot.lane.b32.xlu0 %v734, 24
        %v739 = vpop.permute.xlu0 %738
        %740 = vrot.lane.b32.xlu0 %v735, 24
        %v741 = vpop.permute.xlu0 %740
        %742 = vrot.lane.b32.xlu0 %v736, 24
        %v743 = vpop.permute.xlu0 %742
        %744 = vrot.lane.b32.xlu0 %v737, 24
        %v745 = vpop.permute.xlu0 %744
        %v747 = vsel %vm544, %v503, %v726
        %v749 = vsel %vm544, %v504, %v728
        %v751 = vsel %vm544, %v505, %v730
        %v753 = vsel %vm544, %v506, %v732
        %v754 = vsel %vm557, %v747, %v525
        %v755 = vsel %vm557, %v749, %v527
        %v756 = vsel %vm557, %v751, %v529
        %v757 = vsel %vm557, %v753, %v531
        %v759 = vsel %vm566, %v754, %v739
        %v761 = vsel %vm566, %v755, %v741
        %v763 = vsel %vm566, %v756, %v743
        %v765 = vsel %vm566, %v757, %v745
        %s766 = scalar_lea.vmem [#allocation5], 16
        %v767 = vld [vmem:[%s766] sm:$0xf]
        %v768 = vld [vmem:[%s766 + $0x4] sm:$0xf]
        %v769 = vld [vmem:[%s766 + $0x8] sm:$0xf]
        %v770 = vld [vmem:[%s766 + $0xc] sm:$0xf]
        %v775 = vunpack.c.l.b16 %v767
        %v776 = vunpack.c.l.b16 %v768
        %v777 = vunpack.c.l.b16 %v769
        %v778 = vunpack.c.l.b16 %v770
        %v779 = vpack.c.b16 %v776, %v775
        %v780 = vpack.c.b16 %v778, %v777
        %v783 = vsel %vm591, %v759, 0
        %v785 = vsel %vm591, %v761, 0
        %v787 = vsel %vm591, %v763, 0
        %v789 = vsel %vm591, %v765, 0
        %791 = vmatprep.subr.bf16.mxu0 0
        %792 = vmatpush1.bf16.msra.mxu0 %v779
        %793 = vmatprep.subr.bf16.mxu0 0
        %794 = vmatpush1.bf16.msra.mxu0 %v780
        %795 = vmatprep.subr.bf16.mxu0 0
        %796 = vmatpush1.bf16.msra.mxu0 0
        %797 = vmatprep.subr.bf16.mxu0 0
        %798 = vmatpush1.bf16.msra.mxu0 0
        %799 = vmatprep.subr.bf16.mxu0 0
        %800 = vmatpush1.bf16.msra.mxu0 0
        %801 = vmatprep.subr.bf16.mxu0 0
        %802 = vmatpush1.bf16.msra.mxu0 0
        %803 = vmatprep.subr.bf16.mxu0 0
        %804 = vmatpush1.bf16.msra.mxu0 0
        %805 = vmatprep.subr.bf16.mxu0 0
        %806 = vmatpush1.bf16.msra.mxu0 0
        %807 = vmatprep.subr.bf16.mxu0 0
        %808 = vmatpush1.bf16.msra.mxu0 0
        %809 = vmatprep.subr.bf16.mxu0 0
        %810 = vmatpush1.bf16.msra.mxu0 0
        %811 = vmatprep.subr.bf16.mxu0 0
        %812 = vmatpush1.bf16.msra.mxu0 0
        %813 = vmatprep.subr.bf16.mxu0 0
        %814 = vmatpush1.bf16.msra.mxu0 0
        %815 = vmatprep.subr.bf16.mxu0 0
        %816 = vmatpush1.bf16.msra.mxu0 0
        %817 = vmatprep.subr.bf16.mxu0 0
        %818 = vmatpush1.bf16.msra.mxu0 0
        %819 = vmatprep.subr.bf16.mxu0 0
        %820 = vmatpush1.bf16.msra.mxu0 0
        %821 = vmatprep.subr.bf16.mxu0 0
        %822 = vmatpush1.bf16.msra.mxu0 0
        %823 = vmatprep.mubr.bf16.mxu0 0
        %824 = vmatmul.mubr.bf16.gmra.mrb[0].mxu0 %v783
        %v825 = vpop.f32.mrb[0].mxu0
        %v826 = vadd.f32 0.0, %v825
        %v827 = vpop.f32.mrb[0].mxu0
        %v828 = vpop.f32.mrb[0].mxu0
        %v829 = vadd.f32 0.0, %v828
        %v830 = vpop.f32.mrb[0].mxu0
        %831 = vmatprep.mubr.bf16.mxu0 0
        %832 = vmatmul.mubr.bf16.gmra.mrb[0].mxu0 %v785
        %v833 = vpop.f32.mrb[0].mxu0
        %v834 = vadd.f32 0.0, %v833
        %v835 = vpop.f32.mrb[0].mxu0
        %v836 = vpop.f32.mrb[0].mxu0
        %v837 = vadd.f32 0.0, %v836
        %v838 = vpop.f32.mrb[0].mxu0
        %839 = vmatprep.mubr.bf16.mxu0 0
        %840 = vmatmul.mubr.bf16.gmra.mrb[0].mxu0 %v787
        %v841 = vpop.f32.mrb[0].mxu0
        %v842 = vadd.f32 0.0, %v841
        %v843 = vpop.f32.mrb[0].mxu0
        %v844 = vpop.f32.mrb[0].mxu0
        %v845 = vadd.f32 0.0, %v844
        %v846 = vpop.f32.mrb[0].mxu0
        %847 = vmatprep.mubr.bf16.mxu0 0
        %848 = vmatmul.mubr.bf16.gmra.mrb[0].mxu0 %v789
        %v849 = vpop.f32.mrb[0].mxu0
        %v850 = vadd.f32 0.0, %v849
        %v851 = vpop.f32.mrb[0].mxu0
        %v852 = vpop.f32.mrb[0].mxu0
        %v853 = vadd.f32 0.0, %v852
        %v854 = vpop.f32.mrb[0].mxu0
        %855 = vdwg.mxu0
        %v856 = vxor.u32 %v826, 2147483648
        %v857 = vxor.u32 %v829, 2147483648
        %v858 = vxor.u32 %v834, 2147483648
        %v859 = vxor.u32 %v837, 2147483648
        %v860 = vxor.u32 %v842, 2147483648
        %v861 = vxor.u32 %v845, 2147483648
        %v862 = vxor.u32 %v850, 2147483648
        %v863 = vxor.u32 %v853, 2147483648
        %v864 = vmul.f32 %v856, 1.442695
        %v865 = vpow.pop %v864
        %v866 = vmul.f32 %v857, 1.442695
        %v867 = vpow.pop %v866
        %v868 = vmul.f32 %v858, 1.442695
        %v869 = vpow.pop %v868
        %v870 = vmul.f32 %v859, 1.442695
        %v871 = vpow.pop %v870
        %v872 = vmul.f32 %v860, 1.442695
        %v873 = vpow.pop %v872
        %v874 = vmul.f32 %v861, 1.442695
        %v875 = vpow.pop %v874
        %v876 = vmul.f32 %v862, 1.442695
        %v877 = vpow.pop %v876
        %v878 = vmul.f32 %v863, 1.442695
        %v879 = vpow.pop %v878
        %v880 = vadd.f32 %v865, 1.0
        %v881 = vadd.f32 %v867, 1.0
        %v882 = vadd.f32 %v869, 1.0
        %v883 = vadd.f32 %v871, 1.0
        %v884 = vadd.f32 %v873, 1.0
        %v885 = vadd.f32 %v875, 1.0
        %v886 = vadd.f32 %v877, 1.0
        %v887 = vadd.f32 %v879, 1.0
        %v888 = vrcp.pop %v880
        %v889 = vmul.f32 1.0, %v888
        %v890 = vrcp.pop %v881
        %v891 = vmul.f32 1.0, %v890
        %v892 = vrcp.pop %v882
        %v893 = vmul.f32 1.0, %v892
        %v894 = vrcp.pop %v883
        %v895 = vmul.f32 1.0, %v894
        %v896 = vrcp.pop %v884
        %v897 = vmul.f32 1.0, %v896
        %v898 = vrcp.pop %v885
        %v899 = vmul.f32 1.0, %v898
        %v900 = vrcp.pop %v886
        %v901 = vmul.f32 1.0, %v900
        %v902 = vrcp.pop %v887
        %v903 = vmul.f32 1.0, %v902
        %912 = vrot.lane.b32.xlu0 %v889, 3
        %v913 = vpop.permute.xlu0 %912
        %914 = vrot.lane.b32.xlu0 %v891, 3
        %v915 = vpop.permute.xlu0 %914
        %916 = vrot.lane.b32.xlu0 %v893, 3
        %v917 = vpop.permute.xlu0 %916
        %918 = vrot.lane.b32.xlu0 %v895, 3
        %v919 = vpop.permute.xlu0 %918
        %920 = vrot.lane.b32.xlu0 %v897, 3
        %v921 = vpop.permute.xlu0 %920
        %922 = vrot.lane.b32.xlu0 %v899, 3
        %v923 = vpop.permute.xlu0 %922
        %924 = vrot.lane.b32.xlu0 %v901, 3
        %v925 = vpop.permute.xlu0 %924
        %926 = vrot.lane.b32.xlu0 %v903, 3
        %v927 = vpop.permute.xlu0 %926
        %vm936 = vcmask 23552
        %v937 = vsel %vm936, %v698, %v913
        %v938 = vsel %vm936, %v700, %v915
        %v939 = vsel %vm936, %v702, %v917
        %v940 = vsel %vm936, %v704, %v919
        %v941 = vsel %vm936, %v706, %v921
        %v942 = vsel %vm936, %v708, %v923
        %v943 = vsel %vm936, %v710, %v925
        %v944 = vsel %vm936, %v712, %v927
        %v945 = vpack.c.b16 %v519, %v502
        %946 = vrot.lane.b32.xlu0 %v945, 16
        %v947 = vpop.permute.xlu0 %946
        %v948 = vpack.c.b16 %v291, %v307
        %949 = vrot.lane.b32.xlu0 %v948, 24
        %v950 = vpop.permute.xlu0 %949
        %v951 = vsel %vm557, %v547, %v527
        %v952 = vsel %vm557, %v550, %v529
        %v953 = vsel %vm557, %v553, %v531
        %v955 = vsel %vm557, %v556, %v947
        %v956 = vsel %vm566, %v951, %v539
        %v957 = vsel %vm566, %v952, %v541
        %v958 = vsel %vm566, %v953, %v543
        %v960 = vsel %vm566, %v955, %v950
        %s961 = scalar_lea.vmem [#allocation5], 32
        %v962 = vld [vmem:[%s961] sm:$0xf]
        %v963 = vld [vmem:[%s961 + $0x4] sm:$0xf]
        %v964 = vld [vmem:[%s961 + $0x8] sm:$0xf]
        %v965 = vld [vmem:[%s961 + $0xc] sm:$0xf]
        %v970 = vunpack.c.l.b16 %v962
        %v971 = vunpack.c.l.b16 %v963
        %v972 = vunpack.c.l.b16 %v964
        %v973 = vunpack.c.l.b16 %v965
        %v974 = vpack.c.b16 %v971, %v970
        %v975 = vpack.c.b16 %v973, %v972
        %v978 = vsel %vm591, %v956, 0
        %v980 = vsel %vm591, %v957, 0
        %v982 = vsel %vm591, %v958, 0
        %v984 = vsel %vm591, %v960, 0
        %986 = vmatprep.subr.bf16.mxu0 0
        %987 = vmatpush1.bf16.msra.mxu0 %v974
        %988 = vmatprep.subr.bf16.mxu0 0
        %989 = vmatpush1.bf16.msra.mxu0 %v975
        %990 = vmatprep.subr.bf16.mxu0 0
        %991 = vmatpush1.bf16.msra.mxu0 0
        %992 = vmatprep.subr.bf16.mxu0 0
        %993 = vmatpush1.bf16.msra.mxu0 0
        %994 = vmatprep.subr.bf16.mxu0 0
        %995 = vmatpush1.bf16.msra.mxu0 0
        %996 = vmatprep.subr.bf16.mxu0 0
        %997 = vmatpush1.bf16.msra.mxu0 0
        %998 = vmatprep.subr.bf16.mxu0 0
        %999 = vmatpush1.bf16.msra.mxu0 0
        %1000 = vmatprep.subr.bf16.mxu0 0
        %1001 = vmatpush1.bf16.msra.mxu0 0
        %1002 = vmatprep.subr.bf16.mxu0 0
        %1003 = vmatpush1.bf16.msra.mxu0 0
        %1004 = vmatprep.subr.bf16.mxu0 0
        %1005 = vmatpush1.bf16.msra.mxu0 0
        %1006 = vmatprep.subr.bf16.mxu0 0
        %1007 = vmatpush1.bf16.msra.mxu0 0
        %1008 = vmatprep.subr.bf16.mxu0 0
        %1009 = vmatpush1.bf16.msra.mxu0 0
        %1010 = vmatprep.subr.bf16.mxu0 0
        %1011 = vmatpush1.bf16.msra.mxu0 0
        %1012 = vmatprep.subr.bf16.mxu0 0
        %1013 = vmatpush1.bf16.msra.mxu0 0
        %1014 = vmatprep.subr.bf16.mxu0 0
        %1015 = vmatpush1.bf16.msra.mxu0 0
        %1016 = vmatprep.subr.bf16.mxu0 0
        %1017 = vmatpush1.bf16.msra.mxu0 0
        %1018 = vmatprep.mubr.bf16.mxu0 0
        %1019 = vmatmul.mubr.bf16.gmra.mrb[0].mxu0 %v978
        %v1020 = vpop.f32.mrb[0].mxu0
        %v1021 = vadd.f32 0.0, %v1020
        %v1022 = vpop.f32.mrb[0].mxu0
        %v1023 = vpop.f32.mrb[0].mxu0
        %v1024 = vadd.f32 0.0, %v1023
        %v1025 = vpop.f32.mrb[0].mxu0
        %1026 = vmatprep.mubr.bf16.mxu0 0
        %1027 = vmatmul.mubr.bf16.gmra.mrb[0].mxu0 %v980
        %v1028 = vpop.f32.mrb[0].mxu0
        %v1029 = vadd.f32 0.0, %v1028
        %v1030 = vpop.f32.mrb[0].mxu0
        %v1031 = vpop.f32.mrb[0].mxu0
        %v1032 = vadd.f32 0.0, %v1031
        %v1033 = vpop.f32.mrb[0].mxu0
        %1034 = vmatprep.mubr.bf16.mxu0 0
        %1035 = vmatmul.mubr.bf16.gmra.mrb[0].mxu0 %v982
        %v1036 = vpop.f32.mrb[0].mxu0
        %v1037 = vadd.f32 0.0, %v1036
        %v1038 = vpop.f32.mrb[0].mxu0
        %v1039 = vpop.f32.mrb[0].mxu0
        %v1040 = vadd.f32 0.0, %v1039
        %v1041 = vpop.f32.mrb[0].mxu0
        %1042 = vmatprep.mubr.bf16.mxu0 0
        %1043 = vmatmul.mubr.bf16.gmra.mrb[0].mxu0 %v984
        %v1044 = vpop.f32.mrb[0].mxu0
        %v1045 = vadd.f32 0.0, %v1044
        %v1046 = vpop.f32.mrb[0].mxu0
        %v1047 = vpop.f32.mrb[0].mxu0
        %v1048 = vadd.f32 0.0, %v1047
        %v1049 = vpop.f32.mrb[0].mxu0
        %1050 = vdwg.mxu0
        %v1051 = vxor.u32 %v1021, 2147483648
        %v1052 = vxor.u32 %v1024, 2147483648
        %v1053 = vxor.u32 %v1029, 2147483648
        %v1054 = vxor.u32 %v1032, 2147483648
        %v1055 = vxor.u32 %v1037, 2147483648
        %v1056 = vxor.u32 %v1040, 2147483648
        %v1057 = vxor.u32 %v1045, 2147483648
        %v1058 = vxor.u32 %v1048, 2147483648
        %v1059 = vmul.f32 %v1051, 1.442695
        %v1060 = vpow.pop %v1059
        %v1061 = vmul.f32 %v1052, 1.442695
        %v1062 = vpow.pop %v1061
        %v1063 = vmul.f32 %v1053, 1.442695
        %v1064 = vpow.pop %v1063
        %v1065 = vmul.f32 %v1054, 1.442695
        %v1066 = vpow.pop %v1065
        %v1067 = vmul.f32 %v1055, 1.442695
        %v1068 = vpow.pop %v1067
        %v1069 = vmul.f32 %v1056, 1.442695
        %v1070 = vpow.pop %v1069
        %v1071 = vmul.f32 %v1057, 1.442695
        %v1072 = vpow.pop %v1071
        %v1073 = vmul.f32 %v1058, 1.442695
        %v1074 = vpow.pop %v1073
        %v1075 = vadd.f32 %v1060, 1.0
        %v1076 = vadd.f32 %v1062, 1.0
        %v1077 = vadd.f32 %v1064, 1.0
        %v1078 = vadd.f32 %v1066, 1.0
        %v1079 = vadd.f32 %v1068, 1.0
        %v1080 = vadd.f32 %v1070, 1.0
        %v1081 = vadd.f32 %v1072, 1.0
        %v1082 = vadd.f32 %v1074, 1.0
        %v1083 = vrcp.pop %v1075
        %v1084 = vmul.f32 1.0, %v1083
        %v1085 = vrcp.pop %v1076
        %v1086 = vmul.f32 1.0, %v1085
        %v1087 = vrcp.pop %v1077
        %v1088 = vmul.f32 1.0, %v1087
        %v1089 = vrcp.pop %v1078
        %v1090 = vmul.f32 1.0, %v1089
        %v1091 = vrcp.pop %v1079
        %v1092 = vmul.f32 1.0, %v1091
        %v1093 = vrcp.pop %v1080
        %v1094 = vmul.f32 1.0, %v1093
        %v1095 = vrcp.pop %v1081
        %v1096 = vmul.f32 1.0, %v1095
        %v1097 = vrcp.pop %v1082
        %v1098 = vmul.f32 1.0, %v1097
        %v1099 = vpack.c.b16 %v733, %v720
        %1100 = vrot.lane.b32.xlu0 %v1099, 24
        %v1101 = vpop.permute.xlu0 %1100
        %v1102 = vsel %vm557, %v747, %v527
        %v1103 = vsel %vm557, %v749, %v529
        %v1104 = vsel %vm557, %v751, %v531
        %v1105 = vsel %vm557, %v753, %v947
        %v1106 = vsel %vm566, %v1102, %v741
        %v1107 = vsel %vm566, %v1103, %v743
        %v1108 = vsel %vm566, %v1104, %v745
        %v1110 = vsel %vm566, %v1105, %v1101
        %s1111 = scalar_lea.vmem [#allocation5], 48
        %v1112 = vld [vmem:[%s1111] sm:$0xf]
        %v1113 = vld [vmem:[%s1111 + $0x4] sm:$0xf]
        %v1114 = vld [vmem:[%s1111 + $0x8] sm:$0xf]
        %v1115 = vld [vmem:[%s1111 + $0xc] sm:$0xf]
        %v1120 = vunpack.c.l.b16 %v1112
        %v1121 = vunpack.c.l.b16 %v1113
        %v1122 = vunpack.c.l.b16 %v1114
        %v1123 = vunpack.c.l.b16 %v1115
        %v1124 = vpack.c.b16 %v1121, %v1120
        %v1125 = vpack.c.b16 %v1123, %v1122
        %v1128 = vsel %vm591, %v1106, 0
        %v1130 = vsel %vm591, %v1107, 0
        %v1132 = vsel %vm591, %v1108, 0
        %v1134 = vsel %vm591, %v1110, 0
        %1136 = vmatprep.subr.bf16.mxu0 0
        %1137 = vmatpush1.bf16.msra.mxu0 %v1124
        %1138 = vmatprep.subr.bf16.mxu0 0
        %1139 = vmatpush1.bf16.msra.mxu0 %v1125
        %1140 = vmatprep.subr.bf16.mxu0 0
        %1141 = vmatpush1.bf16.msra.mxu0 0
        %1142 = vmatprep.subr.bf16.mxu0 0
        %1143 = vmatpush1.bf16.msra.mxu0 0
        %1144 = vmatprep.subr.bf16.mxu0 0
        %1145 = vmatpush1.bf16.msra.mxu0 0
        %1146 = vmatprep.subr.bf16.mxu0 0
        %1147 = vmatpush1.bf16.msra.mxu0 0
        %1148 = vmatprep.subr.bf16.mxu0 0
        %1149 = vmatpush1.bf16.msra.mxu0 0
        %1150 = vmatprep.subr.bf16.mxu0 0
        %1151 = vmatpush1.bf16.msra.mxu0 0
        %1152 = vmatprep.subr.bf16.mxu0 0
        %1153 = vmatpush1.bf16.msra.mxu0 0
        %1154 = vmatprep.subr.bf16.mxu0 0
        %1155 = vmatpush1.bf16.msra.mxu0 0
        %1156 = vmatprep.subr.bf16.mxu0 0
        %1157 = vmatpush1.bf16.msra.mxu0 0
        %1158 = vmatprep.subr.bf16.mxu0 0
        %1159 = vmatpush1.bf16.msra.mxu0 0
        %1160 = vmatprep.subr.bf16.mxu0 0
        %1161 = vmatpush1.bf16.msra.mxu0 0
        %1162 = vmatprep.subr.bf16.mxu0 0
        %1163 = vmatpush1.bf16.msra.mxu0 0
        %1164 = vmatprep.subr.bf16.mxu0 0
        %1165 = vmatpush1.bf16.msra.mxu0 0
        %1166 = vmatprep.subr.bf16.mxu0 0
        %1167 = vmatpush1.bf16.msra.mxu0 0
        %1168 = vmatprep.mubr.bf16.mxu0 0
        %1169 = vmatmul.mubr.bf16.gmra.mrb[0].mxu0 %v1128
        %v1170 = vpop.f32.mrb[0].mxu0
        %v1171 = vadd.f32 0.0, %v1170
        %v1172 = vpop.f32.mrb[0].mxu0
        %v1173 = vpop.f32.mrb[0].mxu0
        %v1174 = vadd.f32 0.0, %v1173
        %v1175 = vpop.f32.mrb[0].mxu0
        %1176 = vmatprep.mubr.bf16.mxu0 0
        %1177 = vmatmul.mubr.bf16.gmra.mrb[0].mxu0 %v1130
        %v1178 = vpop.f32.mrb[0].mxu0
        %v1179 = vadd.f32 0.0, %v1178
        %v1180 = vpop.f32.mrb[0].mxu0
        %v1181 = vpop.f32.mrb[0].mxu0
        %v1182 = vadd.f32 0.0, %v1181
        %v1183 = vpop.f32.mrb[0].mxu0
        %1184 = vmatprep.mubr.bf16.mxu0 0
        %1185 = vmatmul.mubr.bf16.gmra.mrb[0].mxu0 %v1132
        %v1186 = vpop.f32.mrb[0].mxu0
        %v1187 = vadd.f32 0.0, %v1186
        %v1188 = vpop.f32.mrb[0].mxu0
        %v1189 = vpop.f32.mrb[0].mxu0
        %v1190 = vadd.f32 0.0, %v1189
        %v1191 = vpop.f32.mrb[0].mxu0
        %1192 = vmatprep.mubr.bf16.mxu0 0
        %1193 = vmatmul.mubr.bf16.gmra.mrb[0].mxu0 %v1134
        %v1194 = vpop.f32.mrb[0].mxu0
        %v1195 = vadd.f32 0.0, %v1194
        %v1196 = vpop.f32.mrb[0].mxu0
        %v1197 = vpop.f32.mrb[0].mxu0
        %v1198 = vadd.f32 0.0, %v1197
        %v1199 = vpop.f32.mrb[0].mxu0
        %1200 = vdwg.mxu0
        %v1201 = vxor.u32 %v1171, 2147483648
        %v1202 = vxor.u32 %v1174, 2147483648
        %v1203 = vxor.u32 %v1179, 2147483648
        %v1204 = vxor.u32 %v1182, 2147483648
        %v1205 = vxor.u32 %v1187, 2147483648
        %v1206 = vxor.u32 %v1190, 2147483648
        %v1207 = vxor.u32 %v1195, 2147483648
        %v1208 = vxor.u32 %v1198, 2147483648
        %v1209 = vmul.f32 %v1201, 1.442695
        %v1210 = vpow.pop %v1209
        %v1211 = vmul.f32 %v1202, 1.442695
        %v1212 = vpow.pop %v1211
        %v1213 = vmul.f32 %v1203, 1.442695
        %v1214 = vpow.pop %v1213
        %v1215 = vmul.f32 %v1204, 1.442695
        %v1216 = vpow.pop %v1215
        %v1217 = vmul.f32 %v1205, 1.442695
        %v1218 = vpow.pop %v1217
        %v1219 = vmul.f32 %v1206, 1.442695
        %v1220 = vpow.pop %v1219
        %v1221 = vmul.f32 %v1207, 1.442695
        %v1222 = vpow.pop %v1221
        %v1223 = vmul.f32 %v1208, 1.442695
        %v1224 = vpow.pop %v1223
        %v1225 = vadd.f32 %v1210, 1.0
        %v1226 = vadd.f32 %v1212, 1.0
        %v1227 = vadd.f32 %v1214, 1.0
        %v1228 = vadd.f32 %v1216, 1.0
        %v1229 = vadd.f32 %v1218, 1.0
        %v1230 = vadd.f32 %v1220, 1.0
        %v1231 = vadd.f32 %v1222, 1.0
        %v1232 = vadd.f32 %v1224, 1.0
        %v1233 = vrcp.pop %v1225
        %v1234 = vmul.f32 1.0, %v1233
        %v1235 = vrcp.pop %v1226
        %v1236 = vmul.f32 1.0, %v1235
        %v1237 = vrcp.pop %v1227
        %v1238 = vmul.f32 1.0, %v1237
        %v1239 = vrcp.pop %v1228
        %v1240 = vmul.f32 1.0, %v1239
        %v1241 = vrcp.pop %v1229
        %v1242 = vmul.f32 1.0, %v1241
        %v1243 = vrcp.pop %v1230
        %v1244 = vmul.f32 1.0, %v1243
        %v1245 = vrcp.pop %v1231
        %v1246 = vmul.f32 1.0, %v1245
        %v1247 = vrcp.pop %v1232
        %v1248 = vmul.f32 1.0, %v1247
        %1257 = vrot.lane.b32.xlu0 %v1234, 3
        %v1258 = vpop.permute.xlu0 %1257
        %1259 = vrot.lane.b32.xlu0 %v1236, 3
        %v1260 = vpop.permute.xlu0 %1259
        %1261 = vrot.lane.b32.xlu0 %v1238, 3
        %v1262 = vpop.permute.xlu0 %1261
        %1263 = vrot.lane.b32.xlu0 %v1240, 3
        %v1264 = vpop.permute.xlu0 %1263
        %1265 = vrot.lane.b32.xlu0 %v1242, 3
        %v1266 = vpop.permute.xlu0 %1265
        %1267 = vrot.lane.b32.xlu0 %v1244, 3
        %v1268 = vpop.permute.xlu0 %1267
        %1269 = vrot.lane.b32.xlu0 %v1246, 3
        %v1270 = vpop.permute.xlu0 %1269
        %1271 = vrot.lane.b32.xlu0 %v1248, 3
        %v1272 = vpop.permute.xlu0 %1271
        %v1281 = vsel %vm936, %v1084, %v1258
        %v1282 = vsel %vm936, %v1086, %v1260
        %v1283 = vsel %vm936, %v1088, %v1262
        %v1284 = vsel %vm936, %v1090, %v1264
        %v1285 = vsel %vm936, %v1092, %v1266
        %v1286 = vsel %vm936, %v1094, %v1268
        %v1287 = vsel %vm936, %v1096, %v1270
        %v1288 = vsel %vm936, %v1098, %v1272
        %vm1289 = vcmask 48128
        %1290 = vst.msk [vmem:[%s176] sm:$0xff] %vm1289, %v937
        %1291 = vst.msk [vmem:[%s176 + $0x8] sm:$0xff] %vm1289, %v1281
        %1292 = vst.msk [vmem:[%s176 + $0x10] sm:$0xff] %vm1289, %v938
        %1293 = vst.msk [vmem:[%s176 + $0x18] sm:$0xff] %vm1289, %v1282
        %1294 = vst.msk [vmem:[%s176 + $0x20] sm:$0xff] %vm1289, %v939
        %1295 = vst.msk [vmem:[%s176 + $0x28] sm:$0xff] %vm1289, %v1283
        %1296 = vst.msk [vmem:[%s176 + $0x30] sm:$0xff] %vm1289, %v940
        %1297 = vst.msk [vmem:[%s176 + $0x38] sm:$0xff] %vm1289, %v1284
        %1298 = vst.msk [vmem:[%s176 + $0x40] sm:$0xff] %vm1289, %v941
        %1299 = vst.msk [vmem:[%s176 + $0x48] sm:$0xff] %vm1289, %v1285
        %1300 = vst.msk [vmem:[%s176 + $0x50] sm:$0xff] %vm1289, %v942
        %1301 = vst.msk [vmem:[%s176 + $0x58] sm:$0xff] %vm1289, %v1286
        %1302 = vst.msk [vmem:[%s176 + $0x60] sm:$0xff] %vm1289, %v943
        %1303 = vst.msk [vmem:[%s176 + $0x68] sm:$0xff] %vm1289, %v1287
        %1304 = vst.msk [vmem:[%s176 + $0x70] sm:$0xff] %vm1289, %v944
        %1305 = vst.msk [vmem:[%s176 + $0x78] sm:$0xff] %vm1289, %v1288
        %s1306 = sand.u32 %s75, 1
        %s1307 = scalar_lea.sflag [#allocation4], %s1306
        %s1308 = sand.u32 %s75, 1
        %s1309 = smul.addr %s1308, 128
        %s1310 = scalar_lea.vmem [#allocation7], %s1309
        // Predicated region
        $region37: #{dcgan_g_nobn_forward.5} parent=27 // pred_check
          %p1311 = pneg %p85
        $region38: #{dcgan_g_nobn_forward.5} parent=27 // pred_check_branch
          %1313 = sbr.rel (%p1311) target = $region40
        $region39: #{dcgan_g_nobn_forward.5} parent=27 // pred_region
          %s1315 = ssub.s32 2048, 2048
          %1316 = vsyncadd %s1307, %s1315
          %s1317 = smul.addr %s20, 16
          %s1318 = smul.addr %s1317, 128
          %s1319 = scalar_lea.hbm %s2, %s1318
          %s1320 = sshll.u32 %s1310, 4
          %s1321 = int_to_ptr.vmem [resolvable:$true] %s1320
          %1326 = dma.vmem_to_hbm [thread:$0]  %s1321, 2048, %s1319, %s1307, 128, 128, 8
        $region40: #{dcgan_g_nobn_forward.5} parent=27 // pred_fallthru
          _
      $region28: #{dcgan_g_nobn_forward.5} parent=5 // pred_fallthru
        _
      %p1327 = scmp.le.s32.totalorder 2, %s15
      // Predicated region
      $region41: #{dcgan_g_nobn_forward.5} parent=5 // pred_check
        %p1328 = pneg %p1327
      $region42: #{dcgan_g_nobn_forward.5} parent=5 // pred_check_branch
        %1330 = sbr.rel (%p1328) target = $region44
      $region43: #{dcgan_g_nobn_forward.5} parent=5 // pred_region
        %s1331 = ssub.s32 %s15, 2
        // Predicated region
        $region45: #{dcgan_g_nobn_forward.5} parent=43 // pred_check
          %p1332 = pneg %p91
        $region46: #{dcgan_g_nobn_forward.5} parent=43 // pred_check_branch
          %1334 = sbr.rel (%p1332) target = $region48
        $region47: #{dcgan_g_nobn_forward.5} parent=43 // pred_region
          %s1335 = sand.u32 %s76, 1
          %s1336 = scalar_lea.sflag [#allocation4], %s1335
          %s1337 = sand.u32 %s76, 1
          %s1338 = smul.addr %s1337, 128
          %s1339 = scalar_lea.vmem [#allocation7], %s1338
          %1340 = dma.done %s1336, 2048
        $region48: #{dcgan_g_nobn_forward.5} parent=43 // pred_fallthru
          _
      $region44: #{dcgan_g_nobn_forward.5} parent=5 // pred_fallthru
        _
    $region6: #{dcgan_g_nobn_forward.5} parent=1 // loop_footer
      %s19 = sadd.s32 1, %s15
    $region7: #{dcgan_g_nobn_forward.5} parent=1 // loop_footer_branch
      %14 = sbr.rel target = $region3
    $region8: #{dcgan_g_nobn_forward.5} parent=1 // loop_exit
      _
    %1341 = vsyncpa [#allocation3], 1
    %s1342 = scalar_lea.sflag [#allocation3], 1
    %1343 = vsyncpa %s1342, 1
    %1344 = vsyncpa [#allocation6], 1
    %1345 = vsyncpa [#allocation4], 1
    %s1346 = scalar_lea.sflag [#allocation4], 1
    %1347 = vsyncpa %s1346, 1

</llo_original>
